<compile_context>
chip_gen: v5e
topology: v5e:2x2
jax: 0.10.0
libtpu: 0.0.40
codegen_flags: <defaults>
</compile_context>

<pallas_src>
import functools

import jax
import jax.numpy as jnp
from jax import lax
from jax.experimental import pallas as pl
from jax.experimental.pallas import tpu as pltpu


def _round_up(a, b):
    return (a + b - 1) // b * b


def _pad_to(a, shape):
    return jnp.pad(a, [(0, t - s) for s, t in zip(a.shape, shape)])


# --------------------------------------------------------------------------
# Kernel 1: LayerNorm1 + combined Q/K/V projection + multi-head attention
#           + out-proj (lane-dense padded output).  One batch element / step.
# --------------------------------------------------------------------------
def _attn_kernel(x_ref, g1_ref, be1_ref,
                 wq_ref, bq_ref, wk_ref, bk_ref, wv_ref, bv_ref,
                 wo_ref, bo_ref, o_ref, *, e_true, num_heads, eps):
    x = x_ref[0]                                   # (S, Ep), pad cols are zero
    S, Ep = x.shape

    # LayerNorm over the true E features (pad columns of gamma/beta are zero,
    # so normalized pad columns come out exactly zero).
    col = lax.broadcasted_iota(jnp.int32, (S, Ep), 1)
    valid = col < e_true
    inv_e = jnp.float32(1.0 / e_true)
    mean = jnp.sum(x, axis=-1, keepdims=True) * inv_e
    xc = jnp.where(valid, x - mean, 0.0)
    var = jnp.sum(xc * xc, axis=-1, keepdims=True) * inv_e
    xn = xc * lax.rsqrt(var + eps) * g1_ref[...] + be1_ref[...]   # (S, Ep)

    # Combined (pre-proj o in_proj) projections.
    q = jnp.dot(xn, wq_ref[...], preferred_element_type=jnp.float32) + bq_ref[...]
    k = jnp.dot(xn, wk_ref[...], preferred_element_type=jnp.float32) + bk_ref[...]
    v = jnp.dot(xn, wv_ref[...], preferred_element_type=jnp.float32) + bv_ref[...]

    hd = e_true // num_heads
    scale = jnp.float32(1.0 / (hd ** 0.5))
    ctx_heads = []
    for h in range(num_heads):                     # static unroll over heads
        sl = slice(h * hd, (h + 1) * hd)
        qh = q[:, sl] * scale                      # (S, hd)
        kh = k[:, sl]
        vh = v[:, sl]
        s = lax.dot_general(qh, kh, (((1,), (1,)), ((), ())),
                            preferred_element_type=jnp.float32)   # (S, S)
        s = s - jnp.max(s, axis=-1, keepdims=True)
        p = jnp.exp(s)
        p = p / jnp.sum(p, axis=-1, keepdims=True)
        ctx_heads.append(jnp.dot(p, vh, preferred_element_type=jnp.float32))
    ctx = jnp.concatenate(ctx_heads, axis=-1)      # (S, e_true)

    # out_proj; Wo/bo are zero-padded to Ep so the store is lane-dense and the
    # pad columns of the output are exactly zero.
    out = jnp.dot(ctx, wo_ref[...], preferred_element_type=jnp.float32) + bo_ref[...]
    o_ref[0] = out.astype(o_ref.dtype)


# --------------------------------------------------------------------------
# Kernel 2: LayerNorm2 + MLP (fc1 -> exact GELU -> fc2), big lane-dense tiles.
# --------------------------------------------------------------------------
def _ln_mlp_kernel(x_ref, g2_ref, be2_ref, w1_ref, b1_ref, w2_ref, b2_ref,
                   o_ref, *, e_true, eps):
    x = x_ref[...]                                 # (tm, Ep), pad cols/rows zero
    rows, Ep = x.shape

    col = lax.broadcasted_iota(jnp.int32, (rows, Ep), 1)
    valid = col < e_true
    inv_e = jnp.float32(1.0 / e_true)
    mean = jnp.sum(x, axis=-1, keepdims=True) * inv_e
    xc = jnp.where(valid, x - mean, 0.0)
    var = jnp.sum(xc * xc, axis=-1, keepdims=True) * inv_e
    xn = xc * lax.rsqrt(var + eps) * g2_ref[...] + be2_ref[...]

    # fc1 (zero-padded to Hp lanes) + exact erf GELU (nn.GELU default).
    h = jnp.dot(xn, w1_ref[...], preferred_element_type=jnp.float32) + b1_ref[...]
    h = 0.5 * h * (1.0 + lax.erf(h * jnp.float32(0.7071067811865476)))
    # TODO(synk): Dropout(drop_p) skipped — module uses drop_p=0 (identity).

    out = jnp.dot(h, w2_ref[...], preferred_element_type=jnp.float32) + b2_ref[...]
    o_ref[...] = out.astype(o_ref.dtype)


@functools.partial(jax.jit, static_argnames=("num_heads", "tm"))
def encoder_block_forward(x, params, *, num_heads, tm=1024):
    """x: (B, S, E) float32.  params: dict of (in,out)-layout weights/biases."""
    B, S, E = x.shape
    H = params["w1"].shape[1]
    assert E % num_heads == 0
    Ep = _round_up(E, 128)
    Hp = _round_up(H, 128)

    # Fold the module's pre-projections (linear_K/Q/V) into the MHA in_proj:
    #   q = (xn @ Wpre + bpre) @ Wi + bi == xn @ (Wpre @ Wi) + (bpre @ Wi + bi)
    wq_c = params["wq_pre"] @ params["wi_q"]
    bq_c = params["bq_pre"] @ params["wi_q"] + params["bi_q"]
    wk_c = params["wk_pre"] @ params["wi_k"]
    bk_c = params["bk_pre"] @ params["wi_k"] + params["bi_k"]
    wv_c = params["wv_pre"] @ params["wi_v"]
    bv_c = params["bv_pre"] @ params["wi_v"] + params["bi_v"]

    # Lane-dense zero padding (wrapper-side layout plumbing, done once).
    x_p = _pad_to(x, (B, S, Ep))
    g1_p = _pad_to(params["ln1_g"].reshape(1, E), (1, Ep))
    be1_p = _pad_to(params["ln1_b"].reshape(1, E), (1, Ep))
    wq_p = _pad_to(wq_c, (Ep, E)); bq_p = bq_c.reshape(1, E)
    wk_p = _pad_to(wk_c, (Ep, E)); bk_p = bk_c.reshape(1, E)
    wv_p = _pad_to(wv_c, (Ep, E)); bv_p = bv_c.reshape(1, E)
    wo_p = _pad_to(params["wo"], (E, Ep))
    bo_p = _pad_to(params["bo"].reshape(1, E), (1, Ep))

    const2d = lambda b: (0, 0)
    attn = pl.pallas_call(
        functools.partial(_attn_kernel, e_true=E, num_heads=num_heads, eps=1e-5),
        out_shape=jax.ShapeDtypeStruct((B, S, Ep), x.dtype),
        grid_spec=pltpu.PrefetchScalarGridSpec(
            num_scalar_prefetch=0,
            grid=(B,),
            in_specs=[
                pl.BlockSpec((1, S, Ep), lambda b: (b, 0, 0)),   # x (padded)
                pl.BlockSpec((1, Ep), const2d),                  # LN1 gamma
                pl.BlockSpec((1, Ep), const2d),                  # LN1 beta
                pl.BlockSpec((Ep, E), const2d),                  # Wq combined
                pl.BlockSpec((1, E), const2d),                   # bq combined
                pl.BlockSpec((Ep, E), const2d),                  # Wk combined
                pl.BlockSpec((1, E), const2d),                   # bk combined
                pl.BlockSpec((Ep, E), const2d),                  # Wv combined
                pl.BlockSpec((1, E), const2d),                   # bv combined
                pl.BlockSpec((E, Ep), const2d),                  # Wo (lane padded)
                pl.BlockSpec((1, Ep), const2d),                  # bo (lane padded)
            ],
            out_specs=pl.BlockSpec((1, S, Ep), lambda b: (b, 0, 0)),
        ),
        compiler_params=pltpu.CompilerParams(
            dimension_semantics=("parallel",)),
    )(x_p, g1_p, be1_p, wq_p, bq_p, wk_p, bk_p, wv_p, bv_p, wo_p, bo_p)

    # ---- LN2 + MLP over flattened tokens with big lane-dense row tiles ----
    g2_p = _pad_to(params["ln2_g"].reshape(1, E), (1, Ep))
    be2_p = _pad_to(params["ln2_b"].reshape(1, E), (1, Ep))
    w1_p = _pad_to(params["w1"], (Ep, Hp))
    b1_p = _pad_to(params["b1"].reshape(1, H), (1, Hp))
    w2_p = _pad_to(params["w2"], (Hp, Ep))
    b2_p = _pad_to(params["b2"].reshape(1, E), (1, Ep))

    M = B * S
    # Big row tile (amortizes the ~0.35us/step overhead); never bigger than the
    # padded row count, and the grid stays >=2 steps whenever M > tm so both
    # v7x TensorCores get work.
    tm_eff = min(tm, _round_up(M, 8))
    Mp = _round_up(M, tm_eff)
    tokens = attn.reshape(M, Ep)
    if Mp != M:
        tokens = jnp.pad(tokens, ((0, Mp - M), (0, 0)))

    out_p = pl.pallas_call(
        functools.partial(_ln_mlp_kernel, e_true=E, eps=1e-5),
        out_shape=jax.ShapeDtypeStruct((Mp, Ep), x.dtype),
        grid_spec=pltpu.PrefetchScalarGridSpec(
            num_scalar_prefetch=0,
            grid=(Mp // tm_eff,),
            in_specs=[
                pl.BlockSpec((tm_eff, Ep), lambda i: (i, 0)),    # token rows
                pl.BlockSpec((1, Ep), lambda i: (0, 0)),         # LN2 gamma
                pl.BlockSpec((1, Ep), lambda i: (0, 0)),         # LN2 beta
                pl.BlockSpec((Ep, Hp), lambda i: (0, 0)),        # W1 (padded)
                pl.BlockSpec((1, Hp), lambda i: (0, 0)),         # b1
                pl.BlockSpec((Hp, Ep), lambda i: (0, 0)),        # W2 (padded)
                pl.BlockSpec((1, Ep), lambda i: (0, 0)),         # b2
            ],
            out_specs=pl.BlockSpec((tm_eff, Ep), lambda i: (i, 0)),
        ),
        compiler_params=pltpu.CompilerParams(
            dimension_semantics=("parallel",)),
    )(tokens, g2_p, be2_p, w1_p, b1_p, w2_p, b2_p)

    return out_p[:M, :E].reshape(B, S, E)


# --------------------------------------------------------------------------
# Pure-JAX reference of the PyTorch EncoderBlock forward.
# --------------------------------------------------------------------------
def _layer_norm_ref(x, g, b, eps=1e-5):
    m = jnp.mean(x, axis=-1, keepdims=True)
    v = jnp.mean((x - m) ** 2, axis=-1, keepdims=True)
    return (x - m) / jnp.sqrt(v + eps) * g + b


def _reference(x, p, num_heads):
    B, S, E = x.shape
    hd = E // num_heads
    xn = _layer_norm_ref(x, p["ln1_g"], p["ln1_b"])
    # forward(): Q = linear_K(xn), K = linear_Q(xn), V = linear_V(xn)
    Q = xn @ p["wq_pre"] + p["bq_pre"]
    K = xn @ p["wk_pre"] + p["bk_pre"]
    V = xn @ p["wv_pre"] + p["bv_pre"]
    q = Q @ p["wi_q"] + p["bi_q"]
    k = K @ p["wi_k"] + p["bi_k"]
    v = V @ p["wi_v"] + p["bi_v"]
    split = lambda t: t.reshape(B, S, num_heads, hd).transpose(0, 2, 1, 3)
    qh, kh, vh = split(q) / jnp.sqrt(jnp.float32(hd)), split(k), split(v)
    s = qh @ kh.transpose(0, 1, 3, 2)
    pattn = jax.nn.softmax(s, axis=-1)
    ctx = (pattn @ vh).transpose(0, 2, 1, 3).reshape(B, S, E)
    attn_out = ctx @ p["wo"] + p["bo"]
    y = _layer_norm_ref(attn_out, p["ln2_g"], p["ln2_b"])
    h = y @ p["w1"] + p["b1"]
    h = 0.5 * h * (1.0 + lax.erf(h / jnp.sqrt(jnp.float32(2.0))))
    return h @ p["w2"] + p["b2"]


if __name__ == "__main__":
    # Small shapes consistent with the module: embed_size=32, hidden_dim=64,
    # num_heads=4, batch=2, seq=8.
    B, S, E, H, NH = 2, 8, 32, 64, 4

    key = jax.random.PRNGKey(0)
    ks = jax.random.split(key, 23)

    def lin(kw, kb, fan_in, fan_out):
        # PyTorch Linear stores weight as (out,in); we keep it pre-transposed
        # (in,out) so the kernels compute x @ W.
        w = jax.random.normal(kw, (fan_in, fan_out), jnp.float32) / jnp.sqrt(fan_in)
        b = 0.02 * jax.random.normal(kb, (fan_out,), jnp.float32)
        return w, b

    x = jax.random.normal(ks[0], (B, S, E), dtype=jnp.float32)

    wq_pre, bq_pre = lin(ks[1], ks[2], E, E)     # module's linear_K (feeds MHA query)
    wk_pre, bk_pre = lin(ks[3], ks[4], E, E)     # module's linear_Q (feeds MHA key)
    wv_pre, bv_pre = lin(ks[5], ks[6], E, E)     # module's linear_V
    wi_q, bi_q = lin(ks[7], ks[8], E, E)         # MHA in_proj query slice
    wi_k, bi_k = lin(ks[9], ks[10], E, E)        # MHA in_proj key slice
    wi_v, bi_v = lin(ks[11], ks[12], E, E)       # MHA in_proj value slice
    wo, bo = lin(ks[13], ks[14], E, E)           # MHA out_proj
    w1, b1 = lin(ks[15], ks[16], E, H)           # MLP fc1
    w2, b2 = lin(ks[17], ks[18], H, E)           # MLP fc2

    params = dict(
        ln1_g=1.0 + 0.05 * jax.random.normal(ks[19], (E,), jnp.float32),
        ln1_b=0.02 * jax.random.normal(ks[20], (E,), jnp.float32),
        ln2_g=1.0 + 0.05 * jax.random.normal(ks[21], (E,), jnp.float32),
        ln2_b=0.02 * jax.random.normal(ks[22], (E,), jnp.float32),
        wq_pre=wq_pre, bq_pre=bq_pre, wk_pre=wk_pre, bk_pre=bk_pre,
        wv_pre=wv_pre, bv_pre=bv_pre,
        wi_q=wi_q, bi_q=bi_q, wi_k=wi_k, bi_k=bi_k, wi_v=wi_v, bi_v=bi_v,
        wo=wo, bo=bo, w1=w1, b1=b1, w2=w2, b2=b2,
    )

    out = encoder_block_forward(x, params, num_heads=NH, tm=1024)
    out = jax.block_until_ready(out)

    ref = _reference(x, params, NH)
    assert out.shape == (B, S, E)
    max_err = float(jnp.max(jnp.abs(out - ref)))
    assert jnp.allclose(out, ref, atol=1e-3, rtol=1e-3), f"mismatch vs reference (max err {max_err})"

    print("KERNEL_OK")
</pallas_src>

<mosaic_0001>
module attributes {stable_mosaic.version = 11 : i64} {
  func.func @_attn_kernel(%arg0: i32, %arg1: memref<1x8x128xf32, #tpu.memory_space<vmem>>, %arg2: memref<1x128xf32, #tpu.memory_space<vmem>>, %arg3: memref<1x128xf32, #tpu.memory_space<vmem>>, %arg4: memref<128x32xf32, #tpu.memory_space<vmem>>, %arg5: memref<1x32xf32, #tpu.memory_space<vmem>>, %arg6: memref<128x32xf32, #tpu.memory_space<vmem>>, %arg7: memref<1x32xf32, #tpu.memory_space<vmem>>, %arg8: memref<128x32xf32, #tpu.memory_space<vmem>>, %arg9: memref<1x32xf32, #tpu.memory_space<vmem>>, %arg10: memref<32x128xf32, #tpu.memory_space<vmem>>, %arg11: memref<1x128xf32, #tpu.memory_space<vmem>>, %arg12: memref<1x8x128xf32, #tpu.memory_space<vmem>>) attributes {dimension_semantics = [#tpu.dimension_semantics<parallel>], iteration_bounds = array<i64: 2>, scalar_prefetch = 0 : i64, scratch_operands = 0 : i64, tpu.core_type = #tpu.core_type<tc>, window_params = [{transform_indices = @transform_0, window_bounds = array<i64: 1, 8, 128>}, {pipeline_mode = #tpu.pipeline_mode<synchronous>, transform_indices = @transform_1, window_bounds = array<i64: 1, 128>}, {pipeline_mode = #tpu.pipeline_mode<synchronous>, transform_indices = @transform_2, window_bounds = array<i64: 1, 128>}, {pipeline_mode = #tpu.pipeline_mode<synchronous>, transform_indices = @transform_3, window_bounds = array<i64: 128, 32>}, {pipeline_mode = #tpu.pipeline_mode<synchronous>, transform_indices = @transform_4, window_bounds = array<i64: 1, 32>}, {pipeline_mode = #tpu.pipeline_mode<synchronous>, transform_indices = @transform_5, window_bounds = array<i64: 128, 32>}, {pipeline_mode = #tpu.pipeline_mode<synchronous>, transform_indices = @transform_6, window_bounds = array<i64: 1, 32>}, {pipeline_mode = #tpu.pipeline_mode<synchronous>, transform_indices = @transform_7, window_bounds = array<i64: 128, 32>}, {pipeline_mode = #tpu.pipeline_mode<synchronous>, transform_indices = @transform_8, window_bounds = array<i64: 1, 32>}, {pipeline_mode = #tpu.pipeline_mode<synchronous>, transform_indices = @transform_9, window_bounds = array<i64: 32, 128>}, {pipeline_mode = #tpu.pipeline_mode<synchronous>, transform_indices = @transform_10, window_bounds = array<i64: 1, 128>}, {transform_indices = @transform_11, window_bounds = array<i64: 1, 8, 128>}]} {
    %c0 = arith.constant 0 : index
    %c0_0 = arith.constant 0 : index
    %c0_1 = arith.constant 0 : index
    %0 = vector.load %arg1[%c0, %c0_0, %c0_1] : memref<1x8x128xf32, #tpu.memory_space<vmem>>, vector<1x8x128xf32>
    %1 = vector.shape_cast %0 : vector<1x8x128xf32> to vector<8x128xf32>
    %2 = tpu.iota {dimensions = array<i32: 1>} : vector<8x128xi32>
    %c32_i32 = arith.constant 32 : i32
    %3 = vector.broadcast %c32_i32 : i32 to vector<8x128xi32>
    %4 = arith.cmpi slt, %2, %3 : vector<8x128xi32>
    %cst = arith.constant dense<0.000000e+00> : vector<8xf32>
    %5 = vector.multi_reduction <add>, %1, %cst [1] : vector<8x128xf32> to vector<8xf32>
    %6 = vector.shape_cast %5 : vector<8xf32> to vector<8x1xf32>
    %cst_2 = arith.constant 3.125000e-02 : f32
    %7 = vector.broadcast %cst_2 : f32 to vector<8x1xf32>
    %8 = arith.mulf %6, %7 : vector<8x1xf32>
    %9 = vector.broadcast %8 : vector<8x1xf32> to vector<8x128xf32>
    %10 = arith.subf %1, %9 : vector<8x128xf32>
    %cst_3 = arith.constant 0.000000e+00 : f32
    %11 = vector.broadcast %cst_3 : f32 to vector<8x128xf32>
    %12 = arith.select %4, %10, %11 : vector<8x128xi1>, vector<8x128xf32>
    %13 = arith.mulf %12, %12 : vector<8x128xf32>
    %cst_4 = arith.constant dense<0.000000e+00> : vector<8xf32>
    %14 = vector.multi_reduction <add>, %13, %cst_4 [1] : vector<8x128xf32> to vector<8xf32>
    %15 = vector.shape_cast %14 : vector<8xf32> to vector<8x1xf32>
    %cst_5 = arith.constant 3.125000e-02 : f32
    %16 = vector.broadcast %cst_5 : f32 to vector<8x1xf32>
    %17 = arith.mulf %15, %16 : vector<8x1xf32>
    %cst_6 = arith.constant 9.99999974E-6 : f32
    %18 = vector.broadcast %cst_6 : f32 to vector<8x1xf32>
    %19 = arith.addf %17, %18 : vector<8x1xf32>
    %20 = math.rsqrt %19 : vector<8x1xf32>
    %21 = vector.broadcast %20 : vector<8x1xf32> to vector<8x128xf32>
    %22 = arith.mulf %12, %21 : vector<8x128xf32>
    %c0_7 = arith.constant 0 : index
    %c0_8 = arith.constant 0 : index
    %23 = vector.load %arg2[%c0_7, %c0_8] : memref<1x128xf32, #tpu.memory_space<vmem>>, vector<1x128xf32>
    %24 = vector.broadcast %23 : vector<1x128xf32> to vector<8x128xf32>
    %25 = arith.mulf %22, %24 : vector<8x128xf32>
    %c0_9 = arith.constant 0 : index
    %c0_10 = arith.constant 0 : index
    %26 = vector.load %arg3[%c0_9, %c0_10] : memref<1x128xf32, #tpu.memory_space<vmem>>, vector<1x128xf32>
    %27 = vector.broadcast %26 : vector<1x128xf32> to vector<8x128xf32>
    %28 = arith.addf %25, %27 : vector<8x128xf32>
    %c0_11 = arith.constant 0 : index
    %c0_12 = arith.constant 0 : index
    %29 = vector.load %arg4[%c0_11, %c0_12] : memref<128x32xf32, #tpu.memory_space<vmem>>, vector<128x32xf32>
    %cst_13 = arith.constant dense<0.000000e+00> : vector<8x32xf32>
    %30 = tpu.matmul %28, %29, %cst_13 {dimension_numbers = #tpu.dot_dimension_numbers<[1], [0], [0], [1], [0, 0, 1, 1], [], []>} : vector<8x128xf32>, vector<128x32xf32>, vector<8x32xf32> -> vector<8x32xf32>
    %c0_14 = arith.constant 0 : index
    %c0_15 = arith.constant 0 : index
    %31 = vector.load %arg5[%c0_14, %c0_15] : memref<1x32xf32, #tpu.memory_space<vmem>>, vector<1x32xf32>
    %32 = vector.broadcast %31 : vector<1x32xf32> to vector<8x32xf32>
    %33 = arith.addf %30, %32 : vector<8x32xf32>
    %c0_16 = arith.constant 0 : index
    %c0_17 = arith.constant 0 : index
    %34 = vector.load %arg6[%c0_16, %c0_17] : memref<128x32xf32, #tpu.memory_space<vmem>>, vector<128x32xf32>
    %cst_18 = arith.constant dense<0.000000e+00> : vector<8x32xf32>
    %35 = tpu.matmul %28, %34, %cst_18 {dimension_numbers = #tpu.dot_dimension_numbers<[1], [0], [0], [1], [0, 0, 1, 1], [], []>} : vector<8x128xf32>, vector<128x32xf32>, vector<8x32xf32> -> vector<8x32xf32>
    %c0_19 = arith.constant 0 : index
    %c0_20 = arith.constant 0 : index
    %36 = vector.load %arg7[%c0_19, %c0_20] : memref<1x32xf32, #tpu.memory_space<vmem>>, vector<1x32xf32>
    %37 = vector.broadcast %36 : vector<1x32xf32> to vector<8x32xf32>
    %38 = arith.addf %35, %37 : vector<8x32xf32>
    %c0_21 = arith.constant 0 : index
    %c0_22 = arith.constant 0 : index
    %39 = vector.load %arg8[%c0_21, %c0_22] : memref<128x32xf32, #tpu.memory_space<vmem>>, vector<128x32xf32>
    %cst_23 = arith.constant dense<0.000000e+00> : vector<8x32xf32>
    %40 = tpu.matmul %28, %39, %cst_23 {dimension_numbers = #tpu.dot_dimension_numbers<[1], [0], [0], [1], [0, 0, 1, 1], [], []>} : vector<8x128xf32>, vector<128x32xf32>, vector<8x32xf32> -> vector<8x32xf32>
    %c0_24 = arith.constant 0 : index
    %c0_25 = arith.constant 0 : index
    %41 = vector.load %arg9[%c0_24, %c0_25] : memref<1x32xf32, #tpu.memory_space<vmem>>, vector<1x32xf32>
    %42 = vector.broadcast %41 : vector<1x32xf32> to vector<8x32xf32>
    %43 = arith.addf %40, %42 : vector<8x32xf32>
    %44 = vector.extract_strided_slice %33 {offsets = [0, 0], sizes = [8, 8], strides = [1, 1]} : vector<8x32xf32> to vector<8x8xf32>
    %cst_26 = arith.constant 0.353553385 : f32
    %45 = vector.broadcast %cst_26 : f32 to vector<8x8xf32>
    %46 = arith.mulf %44, %45 : vector<8x8xf32>
    %47 = vector.extract_strided_slice %38 {offsets = [0, 0], sizes = [8, 8], strides = [1, 1]} : vector<8x32xf32> to vector<8x8xf32>
    %48 = vector.extract_strided_slice %43 {offsets = [0, 0], sizes = [8, 8], strides = [1, 1]} : vector<8x32xf32> to vector<8x8xf32>
    %cst_27 = arith.constant dense<0.000000e+00> : vector<8x8xf32>
    %49 = tpu.matmul %46, %47, %cst_27 {dimension_numbers = #tpu.dot_dimension_numbers<[1], [1], [0], [0], [0, 0, 1, 0], [], []>} : vector<8x8xf32>, vector<8x8xf32>, vector<8x8xf32> -> vector<8x8xf32>
    %cst_28 = arith.constant dense<0xFF800000> : vector<8xf32>
    %50 = vector.multi_reduction <maximumf>, %49, %cst_28 [1] : vector<8x8xf32> to vector<8xf32>
    %51 = vector.shape_cast %50 : vector<8xf32> to vector<8x1xf32>
    %52 = vector.broadcast %51 : vector<8x1xf32> to vector<8x8xf32>
    %53 = arith.subf %49, %52 : vector<8x8xf32>
    %54 = math.exp %53 : vector<8x8xf32>
    %cst_29 = arith.constant dense<0.000000e+00> : vector<8xf32>
    %55 = vector.multi_reduction <add>, %54, %cst_29 [1] : vector<8x8xf32> to vector<8xf32>
    %56 = vector.shape_cast %55 : vector<8xf32> to vector<8x1xf32>
    %57 = vector.broadcast %56 : vector<8x1xf32> to vector<8x8xf32>
    %58 = arith.divf %54, %57 : vector<8x8xf32>
    %cst_30 = arith.constant dense<0.000000e+00> : vector<8x8xf32>
    %59 = tpu.matmul %58, %48, %cst_30 {dimension_numbers = #tpu.dot_dimension_numbers<[1], [0], [0], [1], [0, 0, 1, 1], [], []>} : vector<8x8xf32>, vector<8x8xf32>, vector<8x8xf32> -> vector<8x8xf32>
    %60 = vector.extract_strided_slice %33 {offsets = [0, 8], sizes = [8, 8], strides = [1, 1]} : vector<8x32xf32> to vector<8x8xf32>
    %cst_31 = arith.constant 0.353553385 : f32
    %61 = vector.broadcast %cst_31 : f32 to vector<8x8xf32>
    %62 = arith.mulf %60, %61 : vector<8x8xf32>
    %63 = vector.extract_strided_slice %38 {offsets = [0, 8], sizes = [8, 8], strides = [1, 1]} : vector<8x32xf32> to vector<8x8xf32>
    %64 = vector.extract_strided_slice %43 {offsets = [0, 8], sizes = [8, 8], strides = [1, 1]} : vector<8x32xf32> to vector<8x8xf32>
    %cst_32 = arith.constant dense<0.000000e+00> : vector<8x8xf32>
    %65 = tpu.matmul %62, %63, %cst_32 {dimension_numbers = #tpu.dot_dimension_numbers<[1], [1], [0], [0], [0, 0, 1, 0], [], []>} : vector<8x8xf32>, vector<8x8xf32>, vector<8x8xf32> -> vector<8x8xf32>
    %cst_33 = arith.constant dense<0xFF800000> : vector<8xf32>
    %66 = vector.multi_reduction <maximumf>, %65, %cst_33 [1] : vector<8x8xf32> to vector<8xf32>
    %67 = vector.shape_cast %66 : vector<8xf32> to vector<8x1xf32>
    %68 = vector.broadcast %67 : vector<8x1xf32> to vector<8x8xf32>
    %69 = arith.subf %65, %68 : vector<8x8xf32>
    %70 = math.exp %69 : vector<8x8xf32>
    %cst_34 = arith.constant dense<0.000000e+00> : vector<8xf32>
    %71 = vector.multi_reduction <add>, %70, %cst_34 [1] : vector<8x8xf32> to vector<8xf32>
    %72 = vector.shape_cast %71 : vector<8xf32> to vector<8x1xf32>
    %73 = vector.broadcast %72 : vector<8x1xf32> to vector<8x8xf32>
    %74 = arith.divf %70, %73 : vector<8x8xf32>
    %cst_35 = arith.constant dense<0.000000e+00> : vector<8x8xf32>
    %75 = tpu.matmul %74, %64, %cst_35 {dimension_numbers = #tpu.dot_dimension_numbers<[1], [0], [0], [1], [0, 0, 1, 1], [], []>} : vector<8x8xf32>, vector<8x8xf32>, vector<8x8xf32> -> vector<8x8xf32>
    %76 = vector.extract_strided_slice %33 {offsets = [0, 16], sizes = [8, 8], strides = [1, 1]} : vector<8x32xf32> to vector<8x8xf32>
    %cst_36 = arith.constant 0.353553385 : f32
    %77 = vector.broadcast %cst_36 : f32 to vector<8x8xf32>
    %78 = arith.mulf %76, %77 : vector<8x8xf32>
    %79 = vector.extract_strided_slice %38 {offsets = [0, 16], sizes = [8, 8], strides = [1, 1]} : vector<8x32xf32> to vector<8x8xf32>
    %80 = vector.extract_strided_slice %43 {offsets = [0, 16], sizes = [8, 8], strides = [1, 1]} : vector<8x32xf32> to vector<8x8xf32>
    %cst_37 = arith.constant dense<0.000000e+00> : vector<8x8xf32>
    %81 = tpu.matmul %78, %79, %cst_37 {dimension_numbers = #tpu.dot_dimension_numbers<[1], [1], [0], [0], [0, 0, 1, 0], [], []>} : vector<8x8xf32>, vector<8x8xf32>, vector<8x8xf32> -> vector<8x8xf32>
    %cst_38 = arith.constant dense<0xFF800000> : vector<8xf32>
    %82 = vector.multi_reduction <maximumf>, %81, %cst_38 [1] : vector<8x8xf32> to vector<8xf32>
    %83 = vector.shape_cast %82 : vector<8xf32> to vector<8x1xf32>
    %84 = vector.broadcast %83 : vector<8x1xf32> to vector<8x8xf32>
    %85 = arith.subf %81, %84 : vector<8x8xf32>
    %86 = math.exp %85 : vector<8x8xf32>
    %cst_39 = arith.constant dense<0.000000e+00> : vector<8xf32>
    %87 = vector.multi_reduction <add>, %86, %cst_39 [1] : vector<8x8xf32> to vector<8xf32>
    %88 = vector.shape_cast %87 : vector<8xf32> to vector<8x1xf32>
    %89 = vector.broadcast %88 : vector<8x1xf32> to vector<8x8xf32>
    %90 = arith.divf %86, %89 : vector<8x8xf32>
    %cst_40 = arith.constant dense<0.000000e+00> : vector<8x8xf32>
    %91 = tpu.matmul %90, %80, %cst_40 {dimension_numbers = #tpu.dot_dimension_numbers<[1], [0], [0], [1], [0, 0, 1, 1], [], []>} : vector<8x8xf32>, vector<8x8xf32>, vector<8x8xf32> -> vector<8x8xf32>
    %92 = vector.extract_strided_slice %33 {offsets = [0, 24], sizes = [8, 8], strides = [1, 1]} : vector<8x32xf32> to vector<8x8xf32>
    %cst_41 = arith.constant 0.353553385 : f32
    %93 = vector.broadcast %cst_41 : f32 to vector<8x8xf32>
    %94 = arith.mulf %92, %93 : vector<8x8xf32>
    %95 = vector.extract_strided_slice %38 {offsets = [0, 24], sizes = [8, 8], strides = [1, 1]} : vector<8x32xf32> to vector<8x8xf32>
    %96 = vector.extract_strided_slice %43 {offsets = [0, 24], sizes = [8, 8], strides = [1, 1]} : vector<8x32xf32> to vector<8x8xf32>
    %cst_42 = arith.constant dense<0.000000e+00> : vector<8x8xf32>
    %97 = tpu.matmul %94, %95, %cst_42 {dimension_numbers = #tpu.dot_dimension_numbers<[1], [1], [0], [0], [0, 0, 1, 0], [], []>} : vector<8x8xf32>, vector<8x8xf32>, vector<8x8xf32> -> vector<8x8xf32>
    %cst_43 = arith.constant dense<0xFF800000> : vector<8xf32>
    %98 = vector.multi_reduction <maximumf>, %97, %cst_43 [1] : vector<8x8xf32> to vector<8xf32>
    %99 = vector.shape_cast %98 : vector<8xf32> to vector<8x1xf32>
    %100 = vector.broadcast %99 : vector<8x1xf32> to vector<8x8xf32>
    %101 = arith.subf %97, %100 : vector<8x8xf32>
    %102 = math.exp %101 : vector<8x8xf32>
    %cst_44 = arith.constant dense<0.000000e+00> : vector<8xf32>
    %103 = vector.multi_reduction <add>, %102, %cst_44 [1] : vector<8x8xf32> to vector<8xf32>
    %104 = vector.shape_cast %103 : vector<8xf32> to vector<8x1xf32>
    %105 = vector.broadcast %104 : vector<8x1xf32> to vector<8x8xf32>
    %106 = arith.divf %102, %105 : vector<8x8xf32>
    %cst_45 = arith.constant dense<0.000000e+00> : vector<8x8xf32>
    %107 = tpu.matmul %106, %96, %cst_45 {dimension_numbers = #tpu.dot_dimension_numbers<[1], [0], [0], [1], [0, 0, 1, 1], [], []>} : vector<8x8xf32>, vector<8x8xf32>, vector<8x8xf32> -> vector<8x8xf32>
    %108 = tpu.concatenate %59, %75, %91, %107 in 1 : vector<8x8xf32>, vector<8x8xf32>, vector<8x8xf32>, vector<8x8xf32> -> vector<8x32xf32>
    %c0_46 = arith.constant 0 : index
    %c0_47 = arith.constant 0 : index
    %109 = vector.load %arg10[%c0_46, %c0_47] : memref<32x128xf32, #tpu.memory_space<vmem>>, vector<32x128xf32>
    %cst_48 = arith.constant dense<0.000000e+00> : vector<8x128xf32>
    %110 = tpu.matmul %108, %109, %cst_48 {dimension_numbers = #tpu.dot_dimension_numbers<[1], [0], [0], [1], [0, 0, 1, 1], [], []>} : vector<8x32xf32>, vector<32x128xf32>, vector<8x128xf32> -> vector<8x128xf32>
    %c0_49 = arith.constant 0 : index
    %c0_50 = arith.constant 0 : index
    %111 = vector.load %arg11[%c0_49, %c0_50] : memref<1x128xf32, #tpu.memory_space<vmem>>, vector<1x128xf32>
    %112 = vector.broadcast %111 : vector<1x128xf32> to vector<8x128xf32>
    %113 = arith.addf %110, %112 : vector<8x128xf32>
    %c0_51 = arith.constant 0 : index
    %c0_52 = arith.constant 0 : index
    %c0_53 = arith.constant 0 : index
    %114 = vector.load %arg12[%c0_51, %c0_52, %c0_53] : memref<1x8x128xf32, #tpu.memory_space<vmem>>, vector<1x8x128xf32>
    %115 = vector.shape_cast %114 : vector<1x8x128xf32> to vector<8x128xf32>
    %116 = vector.shape_cast %113 : vector<8x128xf32> to vector<1x8x128xf32>
    tpu.vector_store %arg12[%c0_51, %c0_52, %c0_53], %116 {strides = array<i32>} : memref<1x8x128xf32, #tpu.memory_space<vmem>>, vector<1x8x128xf32>,
    return
  }
  func.func @transform_0(%arg0: i32) -> (i32, i32, i32) {
    %c0_i32 = arith.constant 0 : i32
    %c0_i32_0 = arith.constant 0 : i32
    %c0_i32_1 = arith.constant 0 : i32
    return %arg0, %c0_i32, %c0_i32_0 : i32, i32, i32
  }
  func.func @transform_1(%arg0: i32) -> (i32, i32) {
    %c0_i32 = arith.constant 0 : i32
    %c0_i32_0 = arith.constant 0 : i32
    %c0_i32_1 = arith.constant 0 : i32
    return %c0_i32, %c0_i32_0 : i32, i32
  }
  func.func @transform_2(%arg0: i32) -> (i32, i32) {
    %c0_i32 = arith.constant 0 : i32
    %c0_i32_0 = arith.constant 0 : i32
    %c0_i32_1 = arith.constant 0 : i32
    return %c0_i32, %c0_i32_0 : i32, i32
  }
  func.func @transform_3(%arg0: i32) -> (i32, i32) {
    %c0_i32 = arith.constant 0 : i32
    %c0_i32_0 = arith.constant 0 : i32
    %c0_i32_1 = arith.constant 0 : i32
    return %c0_i32, %c0_i32_0 : i32, i32
  }
  func.func @transform_4(%arg0: i32) -> (i32, i32) {
    %c0_i32 = arith.constant 0 : i32
    %c0_i32_0 = arith.constant 0 : i32
    %c0_i32_1 = arith.constant 0 : i32
    return %c0_i32, %c0_i32_0 : i32, i32
  }
  func.func @transform_5(%arg0: i32) -> (i32, i32) {
    %c0_i32 = arith.constant 0 : i32
    %c0_i32_0 = arith.constant 0 : i32
    %c0_i32_1 = arith.constant 0 : i32
    return %c0_i32, %c0_i32_0 : i32, i32
  }
  func.func @transform_6(%arg0: i32) -> (i32, i32) {
    %c0_i32 = arith.constant 0 : i32
    %c0_i32_0 = arith.constant 0 : i32
    %c0_i32_1 = arith.constant 0 : i32
    return %c0_i32, %c0_i32_0 : i32, i32
  }
  func.func @transform_7(%arg0: i32) -> (i32, i32) {
    %c0_i32 = arith.constant 0 : i32
    %c0_i32_0 = arith.constant 0 : i32
    %c0_i32_1 = arith.constant 0 : i32
    return %c0_i32, %c0_i32_0 : i32, i32
  }
  func.func @transform_8(%arg0: i32) -> (i32, i32) {
    %c0_i32 = arith.constant 0 : i32
    %c0_i32_0 = arith.constant 0 : i32
    %c0_i32_1 = arith.constant 0 : i32
    return %c0_i32, %c0_i32_0 : i32, i32
  }
  func.func @transform_9(%arg0: i32) -> (i32, i32) {
    %c0_i32 = arith.constant 0 : i32
    %c0_i32_0 = arith.constant 0 : i32
    %c0_i32_1 = arith.constant 0 : i32
    return %c0_i32, %c0_i32_0 : i32, i32
  }
  func.func @transform_10(%arg0: i32) -> (i32, i32) {
    %c0_i32 = arith.constant 0 : i32
    %c0_i32_0 = arith.constant 0 : i32
    %c0_i32_1 = arith.constant 0 : i32
    return %c0_i32, %c0_i32_0 : i32, i32
  }
  func.func @transform_11(%arg0: i32) -> (i32, i32, i32) {
    %c0_i32 = arith.constant 0 : i32
    %c0_i32_0 = arith.constant 0 : i32
    %c0_i32_1 = arith.constant 0 : i32
    return %arg0, %c0_i32, %c0_i32_0 : i32, i32, i32
  }
}

module attributes {stable_mosaic.version = 11 : i64} {
  func.func @_ln_mlp_kernel(%arg0: i32, %arg1: memref<16x128xf32, #tpu.memory_space<vmem>>, %arg2: memref<1x128xf32, #tpu.memory_space<vmem>>, %arg3: memref<1x128xf32, #tpu.memory_space<vmem>>, %arg4: memref<128x128xf32, #tpu.memory_space<vmem>>, %arg5: memref<1x128xf32, #tpu.memory_space<vmem>>, %arg6: memref<128x128xf32, #tpu.memory_space<vmem>>, %arg7: memref<1x128xf32, #tpu.memory_space<vmem>>, %arg8: memref<16x128xf32, #tpu.memory_space<vmem>>) attributes {dimension_semantics = [#tpu.dimension_semantics<parallel>], iteration_bounds = array<i64: 1>, scalar_prefetch = 0 : i64, scratch_operands = 0 : i64, tpu.core_type = #tpu.core_type<tc>, window_params = [{transform_indices = @transform_0, window_bounds = array<i64: 16, 128>}, {pipeline_mode = #tpu.pipeline_mode<synchronous>, transform_indices = @transform_1, window_bounds = array<i64: 1, 128>}, {pipeline_mode = #tpu.pipeline_mode<synchronous>, transform_indices = @transform_2, window_bounds = array<i64: 1, 128>}, {pipeline_mode = #tpu.pipeline_mode<synchronous>, transform_indices = @transform_3, window_bounds = array<i64: 128, 128>}, {pipeline_mode = #tpu.pipeline_mode<synchronous>, transform_indices = @transform_4, window_bounds = array<i64: 1, 128>}, {pipeline_mode = #tpu.pipeline_mode<synchronous>, transform_indices = @transform_5, window_bounds = array<i64: 128, 128>}, {pipeline_mode = #tpu.pipeline_mode<synchronous>, transform_indices = @transform_6, window_bounds = array<i64: 1, 128>}, {transform_indices = @transform_7, window_bounds = array<i64: 16, 128>}]} {
    %c0 = arith.constant 0 : index
    %c0_0 = arith.constant 0 : index
    %0 = vector.load %arg1[%c0, %c0_0] : memref<16x128xf32, #tpu.memory_space<vmem>>, vector<16x128xf32>
    %1 = tpu.iota {dimensions = array<i32: 1>} : vector<16x128xi32>
    %c32_i32 = arith.constant 32 : i32
    %2 = vector.broadcast %c32_i32 : i32 to vector<16x128xi32>
    %3 = arith.cmpi slt, %1, %2 : vector<16x128xi32>
    %cst = arith.constant dense<0.000000e+00> : vector<16xf32>
    %4 = vector.multi_reduction <add>, %0, %cst [1] : vector<16x128xf32> to vector<16xf32>
    %5 = vector.shape_cast %4 : vector<16xf32> to vector<16x1xf32>
    %cst_1 = arith.constant 3.125000e-02 : f32
    %6 = vector.broadcast %cst_1 : f32 to vector<16x1xf32>
    %7 = arith.mulf %5, %6 : vector<16x1xf32>
    %8 = vector.broadcast %7 : vector<16x1xf32> to vector<16x128xf32>
    %9 = arith.subf %0, %8 : vector<16x128xf32>
    %cst_2 = arith.constant 0.000000e+00 : f32
    %10 = vector.broadcast %cst_2 : f32 to vector<16x128xf32>
    %11 = arith.select %3, %9, %10 : vector<16x128xi1>, vector<16x128xf32>
    %12 = arith.mulf %11, %11 : vector<16x128xf32>
    %cst_3 = arith.constant dense<0.000000e+00> : vector<16xf32>
    %13 = vector.multi_reduction <add>, %12, %cst_3 [1] : vector<16x128xf32> to vector<16xf32>
    %14 = vector.shape_cast %13 : vector<16xf32> to vector<16x1xf32>
    %cst_4 = arith.constant 3.125000e-02 : f32
    %15 = vector.broadcast %cst_4 : f32 to vector<16x1xf32>
    %16 = arith.mulf %14, %15 : vector<16x1xf32>
    %cst_5 = arith.constant 9.99999974E-6 : f32
    %17 = vector.broadcast %cst_5 : f32 to vector<16x1xf32>
    %18 = arith.addf %16, %17 : vector<16x1xf32>
    %19 = math.rsqrt %18 : vector<16x1xf32>
    %20 = vector.broadcast %19 : vector<16x1xf32> to vector<16x128xf32>
    %21 = arith.mulf %11, %20 : vector<16x128xf32>
    %c0_6 = arith.constant 0 : index
    %c0_7 = arith.constant 0 : index
    %22 = vector.load %arg2[%c0_6, %c0_7] : memref<1x128xf32, #tpu.memory_space<vmem>>, vector<1x128xf32>
    %23 = vector.broadcast %22 : vector<1x128xf32> to vector<16x128xf32>
    %24 = arith.mulf %21, %23 : vector<16x128xf32>
    %c0_8 = arith.constant 0 : index
    %c0_9 = arith.constant 0 : index
    %25 = vector.load %arg3[%c0_8, %c0_9] : memref<1x128xf32, #tpu.memory_space<vmem>>, vector<1x128xf32>
    %26 = vector.broadcast %25 : vector<1x128xf32> to vector<16x128xf32>
    %27 = arith.addf %24, %26 : vector<16x128xf32>
    %c0_10 = arith.constant 0 : index
    %c0_11 = arith.constant 0 : index
    %28 = vector.load %arg4[%c0_10, %c0_11] : memref<128x128xf32, #tpu.memory_space<vmem>>, vector<128x128xf32>
    %cst_12 = arith.constant dense<0.000000e+00> : vector<16x128xf32>
    %29 = tpu.matmul %27, %28, %cst_12 {dimension_numbers = #tpu.dot_dimension_numbers<[1], [0], [0], [1], [0, 0, 1, 1], [], []>} : vector<16x128xf32>, vector<128x128xf32>, vector<16x128xf32> -> vector<16x128xf32>
    %c0_13 = arith.constant 0 : index
    %c0_14 = arith.constant 0 : index
    %30 = vector.load %arg5[%c0_13, %c0_14] : memref<1x128xf32, #tpu.memory_space<vmem>>, vector<1x128xf32>
    %31 = vector.broadcast %30 : vector<1x128xf32> to vector<16x128xf32>
    %32 = arith.addf %29, %31 : vector<16x128xf32>
    %cst_15 = arith.constant 5.000000e-01 : f32
    %33 = vector.broadcast %cst_15 : f32 to vector<16x128xf32>
    %34 = arith.mulf %33, %32 : vector<16x128xf32>
    %cst_16 = arith.constant 0.707106769 : f32
    %35 = vector.broadcast %cst_16 : f32 to vector<16x128xf32>
    %36 = arith.mulf %32, %35 : vector<16x128xf32>
    %37 = math.erf %36 : vector<16x128xf32>
    %cst_17 = arith.constant 1.000000e+00 : f32
    %38 = vector.broadcast %cst_17 : f32 to vector<16x128xf32>
    %39 = arith.addf %38, %37 : vector<16x128xf32>
    %40 = arith.mulf %34, %39 : vector<16x128xf32>
    %c0_18 = arith.constant 0 : index
    %c0_19 = arith.constant 0 : index
    %41 = vector.load %arg6[%c0_18, %c0_19] : memref<128x128xf32, #tpu.memory_space<vmem>>, vector<128x128xf32>
    %cst_20 = arith.constant dense<0.000000e+00> : vector<16x128xf32>
    %42 = tpu.matmul %40, %41, %cst_20 {dimension_numbers = #tpu.dot_dimension_numbers<[1], [0], [0], [1], [0, 0, 1, 1], [], []>} : vector<16x128xf32>, vector<128x128xf32>, vector<16x128xf32> -> vector<16x128xf32>
    %c0_21 = arith.constant 0 : index
    %c0_22 = arith.constant 0 : index
    %43 = vector.load %arg7[%c0_21, %c0_22] : memref<1x128xf32, #tpu.memory_space<vmem>>, vector<1x128xf32>
    %44 = vector.broadcast %43 : vector<1x128xf32> to vector<16x128xf32>
    %45 = arith.addf %42, %44 : vector<16x128xf32>
    %c0_23 = arith.constant 0 : index
    %c0_24 = arith.constant 0 : index
    %46 = vector.load %arg8[%c0_23, %c0_24] : memref<16x128xf32, #tpu.memory_space<vmem>>, vector<16x128xf32>
    tpu.vector_store %arg8[%c0_23, %c0_24], %45 {strides = array<i32>} : memref<16x128xf32, #tpu.memory_space<vmem>>, vector<16x128xf32>,
    return
  }
  func.func @transform_0(%arg0: i32) -> (i32, i32) {
    %c0_i32 = arith.constant 0 : i32
    %c0_i32_0 = arith.constant 0 : i32
    return %arg0, %c0_i32 : i32, i32
  }
  func.func @transform_1(%arg0: i32) -> (i32, i32) {
    %c0_i32 = arith.constant 0 : i32
    %c0_i32_0 = arith.constant 0 : i32
    %c0_i32_1 = arith.constant 0 : i32
    return %c0_i32, %c0_i32_0 : i32, i32
  }
  func.func @transform_2(%arg0: i32) -> (i32, i32) {
    %c0_i32 = arith.constant 0 : i32
    %c0_i32_0 = arith.constant 0 : i32
    %c0_i32_1 = arith.constant 0 : i32
    return %c0_i32, %c0_i32_0 : i32, i32
  }
  func.func @transform_3(%arg0: i32) -> (i32, i32) {
    %c0_i32 = arith.constant 0 : i32
    %c0_i32_0 = arith.constant 0 : i32
    %c0_i32_1 = arith.constant 0 : i32
    return %c0_i32, %c0_i32_0 : i32, i32
  }
  func.func @transform_4(%arg0: i32) -> (i32, i32) {
    %c0_i32 = arith.constant 0 : i32
    %c0_i32_0 = arith.constant 0 : i32
    %c0_i32_1 = arith.constant 0 : i32
    return %c0_i32, %c0_i32_0 : i32, i32
  }
  func.func @transform_5(%arg0: i32) -> (i32, i32) {
    %c0_i32 = arith.constant 0 : i32
    %c0_i32_0 = arith.constant 0 : i32
    %c0_i32_1 = arith.constant 0 : i32
    return %c0_i32, %c0_i32_0 : i32, i32
  }
  func.func @transform_6(%arg0: i32) -> (i32, i32) {
    %c0_i32 = arith.constant 0 : i32
    %c0_i32_0 = arith.constant 0 : i32
    %c0_i32_1 = arith.constant 0 : i32
    return %c0_i32, %c0_i32_0 : i32, i32
  }
  func.func @transform_7(%arg0: i32) -> (i32, i32) {
    %c0_i32 = arith.constant 0 : i32
    %c0_i32_0 = arith.constant 0 : i32
    return %arg0, %c0_i32 : i32, i32
  }
}

</mosaic_0001>

<llo_original>
// kernel: encoder_block_forward.3
$region0: #{encoder_block_forward.3}
  #allocation0 [shape = 'u32[]', space=smem, size = 0x4, offset = 0x4, fixed_abs, tag = 'smem constant byte address 0x4 - core index']
  #allocation1 [shape = 'u32[72,128]{1,0:T(1,128)}', space=vmem, size = 0x9000, scoped, tag = 'internal scratch']
  %s0 = inlined_call_operand.vmem [shape: f32[16,128], index: 0, kind: input, shape index: {}]
  %s1 = inlined_call_operand.vmem [shape: f32[1,128], index: 1, kind: input, shape index: {}]
  %s2 = inlined_call_operand.vmem [shape: f32[1,128], index: 2, kind: input, shape index: {}]
  %s3 = inlined_call_operand.vmem [shape: f32[128,128], index: 3, kind: input, shape index: {}]
  %s4 = inlined_call_operand.vmem [shape: f32[1,128], index: 4, kind: input, shape index: {}]
  %s5 = inlined_call_operand.vmem [shape: f32[128,128], index: 5, kind: input, shape index: {}]
  %s6 = inlined_call_operand.vmem [shape: f32[1,128], index: 6, kind: input, shape index: {}]
  %s7 = inlined_call_operand.vmem [shape: f32[16,128], index: 7, kind: output, shape index: {}]
  %s8 = sld [smem:[#allocation0]]
  $region38: #{encoder_block_forward.3} parent=0
    _
  %s10 = ssub.s32 1, %s8
  %s11 = scalar_select 0, %s10, %s8
  // Predicated region
  $region2: #{encoder_block_forward.3} parent=0 // pred_check
    _
  $region3: #{encoder_block_forward.3} parent=0 // pred_check_branch
    %13 = sbr.rel (0) target = $region5
  $region4: #{encoder_block_forward.3} parent=0 // pred_region
    _
  $region5: #{encoder_block_forward.3} parent=0 // pred_fallthru
    _
  // Predicated region
  $region6: #{encoder_block_forward.3} parent=0 // pred_check
    _
  $region7: #{encoder_block_forward.3} parent=0 // pred_check_branch
    %15 = sbr.rel (0) target = $region9
  $region8: #{encoder_block_forward.3} parent=0 // pred_region
    _
  $region9: #{encoder_block_forward.3} parent=0 // pred_fallthru
    _
  // Predicated region
  $region10: #{encoder_block_forward.3} parent=0 // pred_check
    _
  $region11: #{encoder_block_forward.3} parent=0 // pred_check_branch
    %17 = sbr.rel (0) target = $region13
  $region12: #{encoder_block_forward.3} parent=0 // pred_region
    _
  $region13: #{encoder_block_forward.3} parent=0 // pred_fallthru
    _
  // Predicated region
  $region14: #{encoder_block_forward.3} parent=0 // pred_check
    _
  $region15: #{encoder_block_forward.3} parent=0 // pred_check_branch
    %19 = sbr.rel (0) target = $region17
  $region16: #{encoder_block_forward.3} parent=0 // pred_region
    _
  $region17: #{encoder_block_forward.3} parent=0 // pred_fallthru
    _
  // Predicated region
  $region18: #{encoder_block_forward.3} parent=0 // pred_check
    _
  $region19: #{encoder_block_forward.3} parent=0 // pred_check_branch
    %21 = sbr.rel (0) target = $region21
  $region20: #{encoder_block_forward.3} parent=0 // pred_region
    _
  $region21: #{encoder_block_forward.3} parent=0 // pred_fallthru
    _
  // Predicated region
  $region22: #{encoder_block_forward.3} parent=0 // pred_check
    _
  $region23: #{encoder_block_forward.3} parent=0 // pred_check_branch
    %23 = sbr.rel (0) target = $region25
  $region24: #{encoder_block_forward.3} parent=0 // pred_region
    _
  $region25: #{encoder_block_forward.3} parent=0 // pred_fallthru
    _
  // Predicated region
  $region26: #{encoder_block_forward.3} parent=0 // pred_check
    _
  $region27: #{encoder_block_forward.3} parent=0 // pred_check_branch
    %25 = sbr.rel (0) target = $region29
  $region28: #{encoder_block_forward.3} parent=0 // pred_region
    _
  $region29: #{encoder_block_forward.3} parent=0 // pred_fallthru
    _
  %v26 = vld [vmem:[%s0] sm:$0xff]
  %v27 = vld [vmem:[%s0 + $0x8] sm:$0xff]
  %v28 = vlaneseq
  %v29 = vand.u32 %v28, 127
  %vm30 = vcmp.lt.s32.totalorder %v29, 32
  %31 = vadd.xlane.f32.xlu0 %v26
  %v32 = vpop.xlane.xlu0 %31
  %33 = vadd.xlane.f32.xlu0 %v27
  %v34 = vpop.xlane.xlu0 %33
  %v35 = vmul.f32 %v32, 0.03125
  %v36 = vmul.f32 %v34, 0.03125
  %v37 = vsub.f32 %v26, %v35
  %v38 = vsub.f32 %v27, %v36
  %v39 = vsel %vm30, %v37, 0.0
  %v40 = vsel %vm30, %v38, 0.0
  %v41 = vmul.f32 %v39, %v39
  %v42 = vmul.f32 %v40, %v40
  %43 = vadd.xlane.f32.xlu0 %v41
  %v44 = vpop.xlane.xlu0 %43
  %45 = vadd.xlane.f32.xlu0 %v42
  %v46 = vpop.xlane.xlu0 %45
  %v47 = vmul.f32 %v44, 0.03125
  %v48 = vmul.f32 %v46, 0.03125
  %v49 = vadd.f32 %v47, 1e-05
  %v50 = vadd.f32 %v48, 1e-05
  %v51 = vrsqrt.pop %v49
  %v52 = vmul.f32 %v51, %v49
  %v53 = vmul.f32 %v52, %v51
  %v54 = vmul.f32 0.5, %v53
  %v55 = vsub.f32 1.5, %v54
  %v56 = vmul.f32 %v51, %v55
  %vm57 = vweird.f32 %v49
  %vm58 = vweird.f32 %v51
  %vm59 = vmor %vm57, %vm58
  %v60 = vsel %vm59, %v51, %v56
  %v61 = vrsqrt.pop %v50
  %v62 = vmul.f32 %v61, %v50
  %v63 = vmul.f32 %v62, %v61
  %v64 = vmul.f32 0.5, %v63
  %v65 = vsub.f32 1.5, %v64
  %v66 = vmul.f32 %v61, %v65
  %vm67 = vweird.f32 %v50
  %vm68 = vweird.f32 %v61
  %vm69 = vmor %vm67, %vm68
  %v70 = vsel %vm69, %v61, %v66
  %v71 = vmul.f32 %v39, %v60
  %v72 = vmul.f32 %v40, %v70
  %v73 = vld [vmem:[%s1] sm:$0x1]
  %v75 = vperm.slane %v73, 0
  %v77 = vmul.f32 %v71, %v75
  %v78 = vmul.f32 %v72, %v75
  %v79 = vld [vmem:[%s2] sm:$0x1]
  %v81 = vperm.slane %v79, 0
  %v83 = vadd.f32 %v77, %v81
  %v84 = vadd.f32 %v78, %v81
  %v85 = vld [vmem:[%s3] sm:$0xff]
  %v86 = vld [vmem:[%s3 + $0x8] sm:$0xff]
  %v87 = vld [vmem:[%s3 + $0x10] sm:$0xff]
  %v88 = vld [vmem:[%s3 + $0x18] sm:$0xff]
  %v89 = vld [vmem:[%s3 + $0x20] sm:$0xff]
  %v90 = vld [vmem:[%s3 + $0x28] sm:$0xff]
  %v91 = vld [vmem:[%s3 + $0x30] sm:$0xff]
  %v92 = vld [vmem:[%s3 + $0x38] sm:$0xff]
  %v93 = vld [vmem:[%s3 + $0x40] sm:$0xff]
  %v94 = vld [vmem:[%s3 + $0x48] sm:$0xff]
  %v95 = vld [vmem:[%s3 + $0x50] sm:$0xff]
  %v96 = vld [vmem:[%s3 + $0x58] sm:$0xff]
  %v97 = vld [vmem:[%s3 + $0x60] sm:$0xff]
  %v98 = vld [vmem:[%s3 + $0x68] sm:$0xff]
  %v99 = vld [vmem:[%s3 + $0x70] sm:$0xff]
  %v100 = vld [vmem:[%s3 + $0x78] sm:$0xff]
  %v101 = vld [vmem:[%s4] sm:$0x1]
  %v103 = vperm.slane %v101, 0
  %105 = vmatpush.msra.mxu0 %v100
  %106 = vmatpush.msra.mxu0 %v99
  %107 = vmatpush.msra.mxu0 %v98
  %108 = vmatpush.msra.mxu0 %v97
  %109 = vmatpush.msra.mxu0 %v96
  %110 = vmatpush.msra.mxu0 %v95
  %111 = vmatpush.msra.mxu0 %v94
  %112 = vmatpush.msra.mxu0 %v93
  %113 = vmatpush.msra.mxu0 %v92
  %114 = vmatpush.msra.mxu0 %v91
  %115 = vmatpush.msra.mxu0 %v90
  %116 = vmatpush.msra.mxu0 %v89
  %117 = vmatpush.msra.mxu0 %v88
  %118 = vmatpush.msra.mxu0 %v87
  %119 = vmatpush.msra.mxu0 %v86
  %120 = vmatpush.msra.mxu0 %v85
  %121 = vmatmul.f32.gmra.mxu0 %v83
  %v122 = vpop.f32.mrf.mxu0
  %v123 = vadd.f32 %v103, %v122
  %124 = vmatmul.f32.gmra.mxu0 %v84
  %v125 = vpop.f32.mrf.mxu0
  %v126 = vadd.f32 %v103, %v125
  %127 = vdwg.mxu0
  %v128 = vmul.f32 %v123, 0.5
  %v129 = vmul.f32 %v126, 0.5
  %v130 = vmul.f32 %v123, 0.70710677
  %v131 = vmul.f32 %v126, 0.70710677
  %v132 = vmul.f32 %v130, %v130
  %v133 = vmin.f32 16.0, %v132
  %v134 = vmul.f32 %v133, 2.1237322e-06
  %v135 = vadd.f32 %v134, 0.00028619796
  %v136 = vmul.f32 %v133, %v135
  %v137 = vadd.f32 %v136, 0.0036580483
  %v138 = vmul.f32 %v133, %v137
  %v139 = vadd.f32 %v138, 0.05243302
  %v140 = vmul.f32 %v133, %v139
  %v141 = vadd.f32 %v140, 0.18741608
  %v142 = vmul.f32 %v133, %v141
  %v143 = vadd.f32 %v142, 1.1283791
  %v144 = vmul.f32 %v130, %v143
  %v145 = vmul.f32 %v133, 3.8918573e-05
  %v146 = vadd.f32 %v145, 0.001143296
  %v147 = vmul.f32 %v133, %v146
  %v148 = vadd.f32 %v147, 0.014752088
  %v149 = vmul.f32 %v133, %v148
  %v150 = vadd.f32 %v149, 0.112945676
  %v151 = vmul.f32 %v133, %v150
  %v152 = vadd.f32 %v151, 0.4994258
  %v153 = vmul.f32 %v133, %v152
  %v154 = vadd.f32 %v153, 1.0
  %v155 = vrcp.pop %v154
  %v156 = vmul.f32 %v154, %v155
  %v157 = vsub.f32 1.0, %v156
  %v158 = vmul.f32 %v155, %v157
  %v159 = vadd.f32 %v155, %v158
  %vm160 = vweird.f32 %v154
  %vm161 = vweird.f32 %v155
  %vm162 = vmor %vm160, %vm161
  %v163 = vsel %vm162, %v155, %v159
  %v164 = vand.u32 2147483647, %v154
  %vm165 = vcmp.eq.f32.partialorder %v164, 8.507059e+37
  %v166 = vand.u32 %v154, 2147483648
  %v167 = vor.u32 1.1754944e-38, %v166
  %v168 = vsel %vm165, %v167, %v163
  %v169 = vmul.f32 %v144, %v168
  %v170 = vmin.f32 %v169, 1.0
  %v171 = vmax.f32 %v170, -1.0
  %v172 = vmul.f32 %v131, %v131
  %v173 = vmin.f32 16.0, %v172
  %v174 = vmul.f32 %v173, 2.1237322e-06
  %v175 = vadd.f32 %v174, 0.00028619796
  %v176 = vmul.f32 %v173, %v175
  %v177 = vadd.f32 %v176, 0.0036580483
  %v178 = vmul.f32 %v173, %v177
  %v179 = vadd.f32 %v178, 0.05243302
  %v180 = vmul.f32 %v173, %v179
  %v181 = vadd.f32 %v180, 0.18741608
  %v182 = vmul.f32 %v173, %v181
  %v183 = vadd.f32 %v182, 1.1283791
  %v184 = vmul.f32 %v131, %v183
  %v185 = vmul.f32 %v173, 3.8918573e-05
  %v186 = vadd.f32 %v185, 0.001143296
  %v187 = vmul.f32 %v173, %v186
  %v188 = vadd.f32 %v187, 0.014752088
  %v189 = vmul.f32 %v173, %v188
  %v190 = vadd.f32 %v189, 0.112945676
  %v191 = vmul.f32 %v173, %v190
  %v192 = vadd.f32 %v191, 0.4994258
  %v193 = vmul.f32 %v173, %v192
  %v194 = vadd.f32 %v193, 1.0
  %v195 = vrcp.pop %v194
  %v196 = vmul.f32 %v194, %v195
  %v197 = vsub.f32 1.0, %v196
  %v198 = vmul.f32 %v195, %v197
  %v199 = vadd.f32 %v195, %v198
  %vm200 = vweird.f32 %v194
  %vm201 = vweird.f32 %v195
  %vm202 = vmor %vm200, %vm201
  %v203 = vsel %vm202, %v195, %v199
  %v204 = vand.u32 2147483647, %v194
  %vm205 = vcmp.eq.f32.partialorder %v204, 8.507059e+37
  %v206 = vand.u32 %v194, 2147483648
  %v207 = vor.u32 1.1754944e-38, %v206
  %v208 = vsel %vm205, %v207, %v203
  %v209 = vmul.f32 %v184, %v208
  %v210 = vmin.f32 %v209, 1.0
  %v211 = vmax.f32 %v210, -1.0
  %v212 = vadd.f32 %v171, 1.0
  %v213 = vadd.f32 %v211, 1.0
  %v214 = vmul.f32 %v128, %v212
  %v215 = vmul.f32 %v129, %v213
  %v216 = vld [vmem:[%s5] sm:$0xff]
  %v217 = vld [vmem:[%s5 + $0x8] sm:$0xff]
  %v218 = vld [vmem:[%s5 + $0x10] sm:$0xff]
  %v219 = vld [vmem:[%s5 + $0x18] sm:$0xff]
  %v220 = vld [vmem:[%s5 + $0x20] sm:$0xff]
  %v221 = vld [vmem:[%s5 + $0x28] sm:$0xff]
  %v222 = vld [vmem:[%s5 + $0x30] sm:$0xff]
  %v223 = vld [vmem:[%s5 + $0x38] sm:$0xff]
  %v224 = vld [vmem:[%s5 + $0x40] sm:$0xff]
  %v225 = vld [vmem:[%s5 + $0x48] sm:$0xff]
  %v226 = vld [vmem:[%s5 + $0x50] sm:$0xff]
  %v227 = vld [vmem:[%s5 + $0x58] sm:$0xff]
  %v228 = vld [vmem:[%s5 + $0x60] sm:$0xff]
  %v229 = vld [vmem:[%s5 + $0x68] sm:$0xff]
  %v230 = vld [vmem:[%s5 + $0x70] sm:$0xff]
  %v231 = vld [vmem:[%s5 + $0x78] sm:$0xff]
  %v232 = vld [vmem:[%s6] sm:$0x1]
  %v234 = vperm.slane %v232, 0
  %236 = vmatpush.msra.mxu0 %v231
  %237 = vmatpush.msra.mxu0 %v230
  %238 = vmatpush.msra.mxu0 %v229
  %239 = vmatpush.msra.mxu0 %v228
  %240 = vmatpush.msra.mxu0 %v227
  %241 = vmatpush.msra.mxu0 %v226
  %242 = vmatpush.msra.mxu0 %v225
  %243 = vmatpush.msra.mxu0 %v224
  %244 = vmatpush.msra.mxu0 %v223
  %245 = vmatpush.msra.mxu0 %v222
  %246 = vmatpush.msra.mxu0 %v221
  %247 = vmatpush.msra.mxu0 %v220
  %248 = vmatpush.msra.mxu0 %v219
  %249 = vmatpush.msra.mxu0 %v218
  %250 = vmatpush.msra.mxu0 %v217
  %251 = vmatpush.msra.mxu0 %v216
  %252 = vmatmul.f32.gmra.mxu0 %v214
  %v253 = vpop.f32.mrf.mxu0
  %v254 = vadd.f32 %v234, %v253
  %255 = vmatmul.f32.gmra.mxu0 %v215
  %v256 = vpop.f32.mrf.mxu0
  %v257 = vadd.f32 %v234, %v256
  %258 = vdwg.mxu0
  %259 = vst [vmem:[%s7] sm:$0xff] %v254
  %260 = vst [vmem:[%s7 + $0x8] sm:$0xff] %v257
  // Predicated region
  $region30: #{encoder_block_forward.3} parent=0 // pred_check
    _
  $region31: #{encoder_block_forward.3} parent=0 // pred_check_branch
    %262 = sbr.rel (0) target = $region33
  $region32: #{encoder_block_forward.3} parent=0 // pred_region
    _
  $region33: #{encoder_block_forward.3} parent=0 // pred_fallthru
    _
  // Predicated region
  $region34: #{encoder_block_forward.3} parent=0 // pred_check
    _
  $region35: #{encoder_block_forward.3} parent=0 // pred_check_branch
    %264 = sbr.rel (0) target = $region37
  $region36: #{encoder_block_forward.3} parent=0 // pred_region
    _
  $region37: #{encoder_block_forward.3} parent=0 // pred_fallthru
    _

// kernel: encoder_block_forward.2
$region0: #{encoder_block_forward.2}
  #allocation0 [shape = 'u32[]', space=smem, size = 0x4, offset = 0x4, fixed_abs, tag = 'smem constant byte address 0x4 - core index']
  #allocation1 [shape = 'u32[72,128]{1,0:T(1,128)}', space=vmem, size = 0x9000, scoped, tag = 'internal scratch']
  %s0 = inlined_call_operand.vmem [shape: f32[2,8,128], index: 0, kind: input, shape index: {}]
  %s1 = inlined_call_operand.vmem [shape: f32[1,128], index: 1, kind: input, shape index: {}]
  %s2 = inlined_call_operand.vmem [shape: f32[1,128], index: 2, kind: input, shape index: {}]
  %s3 = inlined_call_operand.vmem [shape: f32[128,32], index: 3, kind: input, shape index: {}]
  %s4 = inlined_call_operand.vmem [shape: f32[1,32], index: 4, kind: input, shape index: {}]
  %s5 = inlined_call_operand.vmem [shape: f32[128,32], index: 5, kind: input, shape index: {}]
  %s6 = inlined_call_operand.vmem [shape: f32[1,32], index: 6, kind: input, shape index: {}]
  %s7 = inlined_call_operand.vmem [shape: f32[128,32], index: 7, kind: input, shape index: {}]
  %s8 = inlined_call_operand.vmem [shape: f32[1,32], index: 8, kind: input, shape index: {}]
  %s9 = inlined_call_operand.vmem [shape: f32[32,128], index: 9, kind: input, shape index: {}]
  %s10 = inlined_call_operand.vmem [shape: f32[1,128], index: 10, kind: input, shape index: {}]
  %s11 = inlined_call_operand.vmem [shape: f32[2,8,128], index: 11, kind: output, shape index: {}]
  %s12 = sld [smem:[#allocation0]]
  $region77: #{encoder_block_forward.2} parent=0
    _
  %s14 = ssub.s32 1, %s12
  %s15 = scalar_select 0, %s14, %s12
  loop: start=0, step=1, limit=4
  $region2: #{encoder_block_forward.2} parent=0 // loop_pre_header
    _
  $region3: #{encoder_block_forward.2} parent=0 // loop_header
    %s17 = sphi 0, %s21
    %p18 = scmp.ge.s32.totalorder %s17, 4
    %s27 = sphi 0, %s29
    %s30 = sphi 0, %s27
    %s31 = sphi 0, %s30
    %s47 = sphi 0, %s31
    %s51 = sphi 0, %s51
    %s53 = sphi 0, %s51
    %s54 = sphi 0, %s53
    %s68 = sphi 0, %s54
    %s72 = sphi 0, %s72
    %s74 = sphi 0, %s72
    %s75 = sphi 0, %s74
    %s89 = sphi 0, %s75
    %s93 = sphi 0, %s93
    %s95 = sphi 0, %s93
    %s96 = sphi 0, %s95
    %s110 = sphi 0, %s96
    %s114 = sphi 0, %s114
    %s116 = sphi 0, %s114
    %s117 = sphi 0, %s116
    %s131 = sphi 0, %s117
    %s135 = sphi 0, %s135
    %s137 = sphi 0, %s135
    %s138 = sphi 0, %s137
    %s152 = sphi 0, %s138
    %s156 = sphi 0, %s156
    %s158 = sphi 0, %s156
    %s159 = sphi 0, %s158
    %s173 = sphi 0, %s159
    %s177 = sphi 0, %s177
    %s179 = sphi 0, %s177
    %s180 = sphi 0, %s179
    %s194 = sphi 0, %s180
    %s198 = sphi 0, %s198
    %s200 = sphi 0, %s198
    %s201 = sphi 0, %s200
    %s215 = sphi 0, %s201
    %s219 = sphi 0, %s219
    %s221 = sphi 0, %s219
    %s222 = sphi 0, %s221
    %s236 = sphi 0, %s222
    %s240 = sphi 0, %s240
    %s242 = sphi 0, %s240
    %s243 = sphi 0, %s242
    %s257 = sphi 0, %s243
    %s263 = sphi 0, %s265
    %s266 = sphi 0, %s263
    %s267 = sphi 0, %s266
    %s283 = sphi 0, %s267
  $region4: #{encoder_block_forward.2} parent=0 // loop_header_branch
    %20 = sbr.rel (%p18) target = $region8
  $region5: #{encoder_block_forward.2} parent=0 // loop_body
    %s22 = ssub.s32 %s17, 1
    %s23 = ssub.s32 %s17, 2
    %s24 = sadd.s32 %s17, 1
    %s25 = ssub.s32 %s17, %s24
    %p26 = scmp.eq.s32.totalorder %s25, 0
    %s28 = sadd.s32 %s27, 1
    %s29 = scalar_select %p26, %s27, %s28
    %p32 = pneg %p26
    %p33 = scmp.eq.s32.totalorder %s17, 1
    %p34 = por %p32, %p33
    %p35 = scmp.ne.s32.totalorder %s27, %s30
    %p36 = scmp.eq.s32.totalorder %s17, 0
    %p37 = por %p35, %p36
    %p38 = scmp.ne.s32.totalorder %s27, %s30
    %p39 = scmp.eq.s32.totalorder %s22, 1
    %p40 = por %p38, %p39
    %p41 = scmp.ne.s32.totalorder %s30, %s31
    %p42 = scmp.eq.s32.totalorder %s22, 0
    %p43 = por %p41, %p42
    %p44 = scmp.ne.s32.totalorder %s30, %s31
    %p45 = scmp.eq.s32.totalorder %s23, 1
    %p46 = por %p44, %p45
    %p48 = scmp.ne.s32.totalorder %s31, %s47
    %p49 = scmp.eq.s32.totalorder %s23, 0
    %p50 = por %p48, %p49
    %s52 = sadd.s32 %s51, 1
    %p55 = scmp.eq.s32.totalorder %s17, 1
    %p56 = scmp.ne.s32.totalorder %s51, %s53
    %p57 = scmp.eq.s32.totalorder %s17, 0
    %p58 = por %p56, %p57
    %p59 = scmp.ne.s32.totalorder %s51, %s53
    %p60 = scmp.eq.s32.totalorder %s22, 1
    %p61 = por %p59, %p60
    %p62 = scmp.ne.s32.totalorder %s53, %s54
    %p63 = scmp.eq.s32.totalorder %s22, 0
    %p64 = por %p62, %p63
    %p65 = scmp.ne.s32.totalorder %s53, %s54
    %p66 = scmp.eq.s32.totalorder %s23, 1
    %p67 = por %p65, %p66
    %p69 = scmp.ne.s32.totalorder %s54, %s68
    %p70 = scmp.eq.s32.totalorder %s23, 0
    %p71 = por %p69, %p70
    %s73 = sadd.s32 %s72, 1
    %p76 = scmp.eq.s32.totalorder %s17, 1
    %p77 = scmp.ne.s32.totalorder %s72, %s74
    %p78 = scmp.eq.s32.totalorder %s17, 0
    %p79 = por %p77, %p78
    %p80 = scmp.ne.s32.totalorder %s72, %s74
    %p81 = scmp.eq.s32.totalorder %s22, 1
    %p82 = por %p80, %p81
    %p83 = scmp.ne.s32.totalorder %s74, %s75
    %p84 = scmp.eq.s32.totalorder %s22, 0
    %p85 = por %p83, %p84
    %p86 = scmp.ne.s32.totalorder %s74, %s75
    %p87 = scmp.eq.s32.totalorder %s23, 1
    %p88 = por %p86, %p87
    %p90 = scmp.ne.s32.totalorder %s75, %s89
    %p91 = scmp.eq.s32.totalorder %s23, 0
    %p92 = por %p90, %p91
    %s94 = sadd.s32 %s93, 1
    %p97 = scmp.eq.s32.totalorder %s17, 1
    %p98 = scmp.ne.s32.totalorder %s93, %s95
    %p99 = scmp.eq.s32.totalorder %s17, 0
    %p100 = por %p98, %p99
    %p101 = scmp.ne.s32.totalorder %s93, %s95
    %p102 = scmp.eq.s32.totalorder %s22, 1
    %p103 = por %p101, %p102
    %p104 = scmp.ne.s32.totalorder %s95, %s96
    %p105 = scmp.eq.s32.totalorder %s22, 0
    %p106 = por %p104, %p105
    %p107 = scmp.ne.s32.totalorder %s95, %s96
    %p108 = scmp.eq.s32.totalorder %s23, 1
    %p109 = por %p107, %p108
    %p111 = scmp.ne.s32.totalorder %s96, %s110
    %p112 = scmp.eq.s32.totalorder %s23, 0
    %p113 = por %p111, %p112
    %s115 = sadd.s32 %s114, 1
    %p118 = scmp.eq.s32.totalorder %s17, 1
    %p119 = scmp.ne.s32.totalorder %s114, %s116
    %p120 = scmp.eq.s32.totalorder %s17, 0
    %p121 = por %p119, %p120
    %p122 = scmp.ne.s32.totalorder %s114, %s116
    %p123 = scmp.eq.s32.totalorder %s22, 1
    %p124 = por %p122, %p123
    %p125 = scmp.ne.s32.totalorder %s116, %s117
    %p126 = scmp.eq.s32.totalorder %s22, 0
    %p127 = por %p125, %p126
    %p128 = scmp.ne.s32.totalorder %s116, %s117
    %p129 = scmp.eq.s32.totalorder %s23, 1
    %p130 = por %p128, %p129
    %p132 = scmp.ne.s32.totalorder %s117, %s131
    %p133 = scmp.eq.s32.totalorder %s23, 0
    %p134 = por %p132, %p133
    %s136 = sadd.s32 %s135, 1
    %p139 = scmp.eq.s32.totalorder %s17, 1
    %p140 = scmp.ne.s32.totalorder %s135, %s137
    %p141 = scmp.eq.s32.totalorder %s17, 0
    %p142 = por %p140, %p141
    %p143 = scmp.ne.s32.totalorder %s135, %s137
    %p144 = scmp.eq.s32.totalorder %s22, 1
    %p145 = por %p143, %p144
    %p146 = scmp.ne.s32.totalorder %s137, %s138
    %p147 = scmp.eq.s32.totalorder %s22, 0
    %p148 = por %p146, %p147
    %p149 = scmp.ne.s32.totalorder %s137, %s138
    %p150 = scmp.eq.s32.totalorder %s23, 1
    %p151 = por %p149, %p150
    %p153 = scmp.ne.s32.totalorder %s138, %s152
    %p154 = scmp.eq.s32.totalorder %s23, 0
    %p155 = por %p153, %p154
    %s157 = sadd.s32 %s156, 1
    %p160 = scmp.eq.s32.totalorder %s17, 1
    %p161 = scmp.ne.s32.totalorder %s156, %s158
    %p162 = scmp.eq.s32.totalorder %s17, 0
    %p163 = por %p161, %p162
    %p164 = scmp.ne.s32.totalorder %s156, %s158
    %p165 = scmp.eq.s32.totalorder %s22, 1
    %p166 = por %p164, %p165
    %p167 = scmp.ne.s32.totalorder %s158, %s159
    %p168 = scmp.eq.s32.totalorder %s22, 0
    %p169 = por %p167, %p168
    %p170 = scmp.ne.s32.totalorder %s158, %s159
    %p171 = scmp.eq.s32.totalorder %s23, 1
    %p172 = por %p170, %p171
    %p174 = scmp.ne.s32.totalorder %s159, %s173
    %p175 = scmp.eq.s32.totalorder %s23, 0
    %p176 = por %p174, %p175
    %s178 = sadd.s32 %s177, 1
    %p181 = scmp.eq.s32.totalorder %s17, 1
    %p182 = scmp.ne.s32.totalorder %s177, %s179
    %p183 = scmp.eq.s32.totalorder %s17, 0
    %p184 = por %p182, %p183
    %p185 = scmp.ne.s32.totalorder %s177, %s179
    %p186 = scmp.eq.s32.totalorder %s22, 1
    %p187 = por %p185, %p186
    %p188 = scmp.ne.s32.totalorder %s179, %s180
    %p189 = scmp.eq.s32.totalorder %s22, 0
    %p190 = por %p188, %p189
    %p191 = scmp.ne.s32.totalorder %s179, %s180
    %p192 = scmp.eq.s32.totalorder %s23, 1
    %p193 = por %p191, %p192
    %p195 = scmp.ne.s32.totalorder %s180, %s194
    %p196 = scmp.eq.s32.totalorder %s23, 0
    %p197 = por %p195, %p196
    %s199 = sadd.s32 %s198, 1
    %p202 = scmp.eq.s32.totalorder %s17, 1
    %p203 = scmp.ne.s32.totalorder %s198, %s200
    %p204 = scmp.eq.s32.totalorder %s17, 0
    %p205 = por %p203, %p204
    %p206 = scmp.ne.s32.totalorder %s198, %s200
    %p207 = scmp.eq.s32.totalorder %s22, 1
    %p208 = por %p206, %p207
    %p209 = scmp.ne.s32.totalorder %s200, %s201
    %p210 = scmp.eq.s32.totalorder %s22, 0
    %p211 = por %p209, %p210
    %p212 = scmp.ne.s32.totalorder %s200, %s201
    %p213 = scmp.eq.s32.totalorder %s23, 1
    %p214 = por %p212, %p213
    %p216 = scmp.ne.s32.totalorder %s201, %s215
    %p217 = scmp.eq.s32.totalorder %s23, 0
    %p218 = por %p216, %p217
    %s220 = sadd.s32 %s219, 1
    %p223 = scmp.eq.s32.totalorder %s17, 1
    %p224 = scmp.ne.s32.totalorder %s219, %s221
    %p225 = scmp.eq.s32.totalorder %s17, 0
    %p226 = por %p224, %p225
    %p227 = scmp.ne.s32.totalorder %s219, %s221
    %p228 = scmp.eq.s32.totalorder %s22, 1
    %p229 = por %p227, %p228
    %p230 = scmp.ne.s32.totalorder %s221, %s222
    %p231 = scmp.eq.s32.totalorder %s22, 0
    %p232 = por %p230, %p231
    %p233 = scmp.ne.s32.totalorder %s221, %s222
    %p234 = scmp.eq.s32.totalorder %s23, 1
    %p235 = por %p233, %p234
    %p237 = scmp.ne.s32.totalorder %s222, %s236
    %p238 = scmp.eq.s32.totalorder %s23, 0
    %p239 = por %p237, %p238
    %s241 = sadd.s32 %s240, 1
    %p244 = scmp.eq.s32.totalorder %s17, 1
    %p245 = scmp.ne.s32.totalorder %s240, %s242
    %p246 = scmp.eq.s32.totalorder %s17, 0
    %p247 = por %p245, %p246
    %p248 = scmp.ne.s32.totalorder %s240, %s242
    %p249 = scmp.eq.s32.totalorder %s22, 1
    %p250 = por %p248, %p249
    %p251 = scmp.ne.s32.totalorder %s242, %s243
    %p252 = scmp.eq.s32.totalorder %s22, 0
    %p253 = por %p251, %p252
    %p254 = scmp.ne.s32.totalorder %s242, %s243
    %p255 = scmp.eq.s32.totalorder %s23, 1
    %p256 = por %p254, %p255
    %p258 = scmp.ne.s32.totalorder %s243, %s257
    %p259 = scmp.eq.s32.totalorder %s23, 0
    %p260 = por %p258, %p259
    %s261 = ssub.s32 %s17, %s24
    %p262 = scmp.eq.s32.totalorder %s261, 0
    %s264 = sadd.s32 %s263, 1
    %s265 = scalar_select %p262, %s263, %s264
    %p268 = pneg %p262
    %p269 = scmp.eq.s32.totalorder %s17, 1
    %p270 = por %p268, %p269
    %p271 = scmp.ne.s32.totalorder %s263, %s266
    %p272 = scmp.eq.s32.totalorder %s17, 0
    %p273 = por %p271, %p272
    %p274 = scmp.ne.s32.totalorder %s263, %s266
    %p275 = scmp.eq.s32.totalorder %s22, 1
    %p276 = por %p274, %p275
    %p277 = scmp.ne.s32.totalorder %s266, %s267
    %p278 = scmp.eq.s32.totalorder %s22, 0
    %p279 = por %p277, %p278
    %p280 = scmp.ne.s32.totalorder %s266, %s267
    %p281 = scmp.eq.s32.totalorder %s23, 1
    %p282 = por %p280, %p281
    %p284 = scmp.ne.s32.totalorder %s267, %s283
    %p285 = scmp.eq.s32.totalorder %s23, 0
    %p286 = por %p284, %p285
    %p287 = scmp.le.s32.totalorder 1, %s17
    %p288 = scmp.lt.s32.totalorder %s17, 3
    %p289 = pnand %p287, %p288
    %p290 = pneg %p289
    // Predicated region
    $region9: #{encoder_block_forward.2} parent=5 // pred_check
      _
    $region10: #{encoder_block_forward.2} parent=5 // pred_check_branch
      %292 = sbr.rel (%p289) target = $region12
    $region11: #{encoder_block_forward.2} parent=5 // pred_region
      %s293 = ssub.s32 %s17, 1
      // Predicated region
      $region13: #{encoder_block_forward.2} parent=11 // pred_check
        %p294 = pneg %p64
      $region14: #{encoder_block_forward.2} parent=11 // pred_check_branch
        %296 = sbr.rel (%p294) target = $region16
      $region15: #{encoder_block_forward.2} parent=11 // pred_region
        _
      $region16: #{encoder_block_forward.2} parent=11 // pred_fallthru
        _
      // Predicated region
      $region17: #{encoder_block_forward.2} parent=11 // pred_check
        %p297 = pneg %p85
      $region18: #{encoder_block_forward.2} parent=11 // pred_check_branch
        %299 = sbr.rel (%p297) target = $region20
      $region19: #{encoder_block_forward.2} parent=11 // pred_region
        _
      $region20: #{encoder_block_forward.2} parent=11 // pred_fallthru
        _
      // Predicated region
      $region21: #{encoder_block_forward.2} parent=11 // pred_check
        %p300 = pneg %p106
      $region22: #{encoder_block_forward.2} parent=11 // pred_check_branch
        %302 = sbr.rel (%p300) target = $region24
      $region23: #{encoder_block_forward.2} parent=11 // pred_region
        _
      $region24: #{encoder_block_forward.2} parent=11 // pred_fallthru
        _
      // Predicated region
      $region25: #{encoder_block_forward.2} parent=11 // pred_check
        %p303 = pneg %p127
      $region26: #{encoder_block_forward.2} parent=11 // pred_check_branch
        %305 = sbr.rel (%p303) target = $region28
      $region27: #{encoder_block_forward.2} parent=11 // pred_region
        _
      $region28: #{encoder_block_forward.2} parent=11 // pred_fallthru
        _
      // Predicated region
      $region29: #{encoder_block_forward.2} parent=11 // pred_check
        %p306 = pneg %p148
      $region30: #{encoder_block_forward.2} parent=11 // pred_check_branch
        %308 = sbr.rel (%p306) target = $region32
      $region31: #{encoder_block_forward.2} parent=11 // pred_region
        _
      $region32: #{encoder_block_forward.2} parent=11 // pred_fallthru
        _
      // Predicated region
      $region33: #{encoder_block_forward.2} parent=11 // pred_check
        %p309 = pneg %p169
      $region34: #{encoder_block_forward.2} parent=11 // pred_check_branch
        %311 = sbr.rel (%p309) target = $region36
      $region35: #{encoder_block_forward.2} parent=11 // pred_region
        _
      $region36: #{encoder_block_forward.2} parent=11 // pred_fallthru
        _
      // Predicated region
      $region37: #{encoder_block_forward.2} parent=11 // pred_check
        %p312 = pneg %p190
      $region38: #{encoder_block_forward.2} parent=11 // pred_check_branch
        %314 = sbr.rel (%p312) target = $region40
      $region39: #{encoder_block_forward.2} parent=11 // pred_region
        _
      $region40: #{encoder_block_forward.2} parent=11 // pred_fallthru
        _
      // Predicated region
      $region41: #{encoder_block_forward.2} parent=11 // pred_check
        %p315 = pneg %p211
      $region42: #{encoder_block_forward.2} parent=11 // pred_check_branch
        %317 = sbr.rel (%p315) target = $region44
      $region43: #{encoder_block_forward.2} parent=11 // pred_region
        _
      $region44: #{encoder_block_forward.2} parent=11 // pred_fallthru
        _
      // Predicated region
      $region45: #{encoder_block_forward.2} parent=11 // pred_check
        %p318 = pneg %p232
      $region46: #{encoder_block_forward.2} parent=11 // pred_check_branch
        %320 = sbr.rel (%p318) target = $region48
      $region47: #{encoder_block_forward.2} parent=11 // pred_region
        _
      $region48: #{encoder_block_forward.2} parent=11 // pred_fallthru
        _
      // Predicated region
      $region49: #{encoder_block_forward.2} parent=11 // pred_check
        %p321 = pneg %p253
      $region50: #{encoder_block_forward.2} parent=11 // pred_check_branch
        %323 = sbr.rel (%p321) target = $region52
      $region51: #{encoder_block_forward.2} parent=11 // pred_region
        _
      $region52: #{encoder_block_forward.2} parent=11 // pred_fallthru
        _
    $region12: #{encoder_block_forward.2} parent=5 // pred_fallthru
      _
    %p324 = scmp.lt.s32.totalorder %s17, 2
    // Predicated region
    $region53: #{encoder_block_forward.2} parent=5 // pred_check
      %p325 = pneg %p324
    $region54: #{encoder_block_forward.2} parent=5 // pred_check_branch
      %327 = sbr.rel (%p325) target = $region56
    $region55: #{encoder_block_forward.2} parent=5 // pred_region
      // Predicated region
      $region57: #{encoder_block_forward.2} parent=55 // pred_check
        %p328 = pneg %p37
      $region58: #{encoder_block_forward.2} parent=55 // pred_check_branch
        %330 = sbr.rel (%p328) target = $region60
      $region59: #{encoder_block_forward.2} parent=55 // pred_region
        %p331 = scmp.lt.s32.totalorder %s17, 1
        %s332 = scalar_select %p331, %s17, 1
        %s333 = smul.addr %s332, 8
        %s334 = scalar_lea.vmem %s0, %s333
      $region60: #{encoder_block_forward.2} parent=55 // pred_fallthru
        _
    $region56: #{encoder_block_forward.2} parent=5 // pred_fallthru
      _
    %p335 = scmp.le.s32.totalorder 1, %s17
    %p336 = scmp.lt.s32.totalorder %s17, 3
    %p337 = pnand %p335, %p336
    %p338 = pneg %p337
    // Predicated region
    $region61: #{encoder_block_forward.2} parent=5 // pred_check
      _
    $region62: #{encoder_block_forward.2} parent=5 // pred_check_branch
      %340 = sbr.rel (%p337) target = $region64
    $region63: #{encoder_block_forward.2} parent=5 // pred_region
      %s341 = ssub.s32 %s17, 1
      %p342 = scmp.lt.s32.totalorder %s22, 1
      %s343 = scalar_select %p342, %s22, 1
      %s344 = smul.addr %s343, 8
      %s345 = scalar_lea.vmem %s0, %s344
      %p346 = pneg %p43
      %p347 = pneg %p40
      %p348 = pneg %p64
      %p349 = pneg %p61
      %p350 = pneg %p85
      %p351 = pneg %p82
      %p352 = pneg %p106
      %p353 = pneg %p103
      %p354 = pneg %p127
      %p355 = pneg %p124
      %p356 = pneg %p148
      %p357 = pneg %p145
      %p358 = pneg %p169
      %p359 = pneg %p166
      %p360 = pneg %p190
      %p361 = pneg %p187
      %p362 = pneg %p211
      %p363 = pneg %p208
      %p364 = pneg %p232
      %p365 = pneg %p229
      %p366 = pneg %p253
      %p367 = pneg %p250
      %p368 = pneg %p279
      %p369 = pneg %p276
      %p370 = scmp.lt.s32.totalorder %s22, 1
      %s371 = scalar_select %p370, %s22, 1
      %s372 = smul.addr %s371, 8
      %s373 = scalar_lea.vmem %s11, %s372
      %p374 = scmp.lt.s32.totalorder %s22, 1
      %s375 = scalar_select %p374, %s22, 1
      %s376 = smul.addr %s375, 8
      %s377 = scalar_lea.vmem %s0, %s376
      %p378 = scmp.lt.s32.totalorder %s22, 1
      %s379 = scalar_select %p378, %s22, 1
      %s380 = smul.addr %s379, 8
      %s381 = scalar_lea.vmem %s11, %s380
      %v382 = vld [vmem:[%s377] sm:$0xff]
      %v383 = vlaneseq
      %v384 = vand.u32 %v383, 127
      %vm385 = vcmp.lt.s32.totalorder %v384, 32
      %386 = vadd.xlane.f32.xlu0 %v382
      %v387 = vpop.xlane.xlu0 %386
      %v388 = vmul.f32 %v387, 0.03125
      %v389 = vsub.f32 %v382, %v388
      %v390 = vsel %vm385, %v389, 0.0
      %v391 = vmul.f32 %v390, %v390
      %392 = vadd.xlane.f32.xlu0 %v391
      %v393 = vpop.xlane.xlu0 %392
      %v394 = vmul.f32 %v393, 0.03125
      %v395 = vadd.f32 %v394, 1e-05
      %v396 = vrsqrt.pop %v395
      %v397 = vmul.f32 %v396, %v395
      %v398 = vmul.f32 %v397, %v396
      %v399 = vmul.f32 0.5, %v398
      %v400 = vsub.f32 1.5, %v399
      %v401 = vmul.f32 %v396, %v400
      %vm402 = vweird.f32 %v395
      %vm403 = vweird.f32 %v396
      %vm404 = vmor %vm402, %vm403
      %v405 = vsel %vm404, %v396, %v401
      %v406 = vmul.f32 %v390, %v405
      %v407 = vld [vmem:[%s1] sm:$0x1]
      %v409 = vperm.slane %v407, 0
      %v411 = vmul.f32 %v406, %v409
      %v412 = vld [vmem:[%s2] sm:$0x1]
      %v414 = vperm.slane %v412, 0
      %v416 = vadd.f32 %v411, %v414
      %v417 = vld [vmem:[%s3] sm:$0xff]
      %v418 = vld [vmem:[%s3 + $0x8] sm:$0xff]
      %v419 = vld [vmem:[%s3 + $0x10] sm:$0xff]
      %v420 = vld [vmem:[%s3 + $0x18] sm:$0xff]
      %v421 = vld [vmem:[%s3 + $0x20] sm:$0xff]
      %v422 = vld [vmem:[%s3 + $0x28] sm:$0xff]
      %v423 = vld [vmem:[%s3 + $0x30] sm:$0xff]
      %v424 = vld [vmem:[%s3 + $0x38] sm:$0xff]
      %v425 = vld [vmem:[%s3 + $0x40] sm:$0xff]
      %v426 = vld [vmem:[%s3 + $0x48] sm:$0xff]
      %v427 = vld [vmem:[%s3 + $0x50] sm:$0xff]
      %v428 = vld [vmem:[%s3 + $0x58] sm:$0xff]
      %v429 = vld [vmem:[%s3 + $0x60] sm:$0xff]
      %v430 = vld [vmem:[%s3 + $0x68] sm:$0xff]
      %v431 = vld [vmem:[%s3 + $0x70] sm:$0xff]
      %v432 = vld [vmem:[%s3 + $0x78] sm:$0xff]
      %v433 = vld [vmem:[%s4] sm:$0x1]
      %v435 = vperm.slane %v433, 0
      %437 = vmatpush.msra.mxu0 %v432
      %438 = vmatpush.msra.mxu0 %v431
      %439 = vmatpush.msra.mxu0 %v430
      %440 = vmatpush.msra.mxu0 %v429
      %441 = vmatpush.msra.mxu0 %v428
      %442 = vmatpush.msra.mxu0 %v427
      %443 = vmatpush.msra.mxu0 %v426
      %444 = vmatpush.msra.mxu0 %v425
      %445 = vmatpush.msra.mxu0 %v424
      %446 = vmatpush.msra.mxu0 %v423
      %447 = vmatpush.msra.mxu0 %v422
      %448 = vmatpush.msra.mxu0 %v421
      %449 = vmatpush.msra.mxu0 %v420
      %450 = vmatpush.msra.mxu0 %v419
      %451 = vmatpush.msra.mxu0 %v418
      %452 = vmatpush.msra.mxu0 %v417
      %453 = vmatmul.f32.gmra.mxu0 %v416
      %v454 = vpop.f32.mrf.mxu0
      %v455 = vadd.f32 %v435, %v454
      %456 = vdwg.mxu0
      %v457 = vld [vmem:[%s5] sm:$0xff]
      %v458 = vld [vmem:[%s5 + $0x8] sm:$0xff]
      %v459 = vld [vmem:[%s5 + $0x10] sm:$0xff]
      %v460 = vld [vmem:[%s5 + $0x18] sm:$0xff]
      %v461 = vld [vmem:[%s5 + $0x20] sm:$0xff]
      %v462 = vld [vmem:[%s5 + $0x28] sm:$0xff]
      %v463 = vld [vmem:[%s5 + $0x30] sm:$0xff]
      %v464 = vld [vmem:[%s5 + $0x38] sm:$0xff]
      %v465 = vld [vmem:[%s5 + $0x40] sm:$0xff]
      %v466 = vld [vmem:[%s5 + $0x48] sm:$0xff]
      %v467 = vld [vmem:[%s5 + $0x50] sm:$0xff]
      %v468 = vld [vmem:[%s5 + $0x58] sm:$0xff]
      %v469 = vld [vmem:[%s5 + $0x60] sm:$0xff]
      %v470 = vld [vmem:[%s5 + $0x68] sm:$0xff]
      %v471 = vld [vmem:[%s5 + $0x70] sm:$0xff]
      %v472 = vld [vmem:[%s5 + $0x78] sm:$0xff]
      %v473 = vld [vmem:[%s6] sm:$0x1]
      %v475 = vperm.slane %v473, 0
      %477 = vmatpush.msra.mxu0 %v472
      %478 = vmatpush.msra.mxu0 %v471
      %479 = vmatpush.msra.mxu0 %v470
      %480 = vmatpush.msra.mxu0 %v469
      %481 = vmatpush.msra.mxu0 %v468
      %482 = vmatpush.msra.mxu0 %v467
      %483 = vmatpush.msra.mxu0 %v466
      %484 = vmatpush.msra.mxu0 %v465
      %485 = vmatpush.msra.mxu0 %v464
      %486 = vmatpush.msra.mxu0 %v463
      %487 = vmatpush.msra.mxu0 %v462
      %488 = vmatpush.msra.mxu0 %v461
      %489 = vmatpush.msra.mxu0 %v460
      %490 = vmatpush.msra.mxu0 %v459
      %491 = vmatpush.msra.mxu0 %v458
      %492 = vmatpush.msra.mxu0 %v457
      %493 = vmatmul.f32.gmra.mxu0 %v416
      %v494 = vpop.f32.mrf.mxu0
      %v495 = vadd.f32 %v475, %v494
      %496 = vdwg.mxu0
      %v497 = vld [vmem:[%s7] sm:$0xff]
      %v498 = vld [vmem:[%s7 + $0x8] sm:$0xff]
      %v499 = vld [vmem:[%s7 + $0x10] sm:$0xff]
      %v500 = vld [vmem:[%s7 + $0x18] sm:$0xff]
      %v501 = vld [vmem:[%s7 + $0x20] sm:$0xff]
      %v502 = vld [vmem:[%s7 + $0x28] sm:$0xff]
      %v503 = vld [vmem:[%s7 + $0x30] sm:$0xff]
      %v504 = vld [vmem:[%s7 + $0x38] sm:$0xff]
      %v505 = vld [vmem:[%s7 + $0x40] sm:$0xff]
      %v506 = vld [vmem:[%s7 + $0x48] sm:$0xff]
      %v507 = vld [vmem:[%s7 + $0x50] sm:$0xff]
      %v508 = vld [vmem:[%s7 + $0x58] sm:$0xff]
      %v509 = vld [vmem:[%s7 + $0x60] sm:$0xff]
      %v510 = vld [vmem:[%s7 + $0x68] sm:$0xff]
      %v511 = vld [vmem:[%s7 + $0x70] sm:$0xff]
      %v512 = vld [vmem:[%s7 + $0x78] sm:$0xff]
      %v513 = vld [vmem:[%s8] sm:$0x1]
      %v515 = vperm.slane %v513, 0
      %517 = vmatpush.msra.mxu0 %v512
      %518 = vmatpush.msra.mxu0 %v511
      %519 = vmatpush.msra.mxu0 %v510
      %520 = vmatpush.msra.mxu0 %v509
      %521 = vmatpush.msra.mxu0 %v508
      %522 = vmatpush.msra.mxu0 %v507
      %523 = vmatpush.msra.mxu0 %v506
      %524 = vmatpush.msra.mxu0 %v505
      %525 = vmatpush.msra.mxu0 %v504
      %526 = vmatpush.msra.mxu0 %v503
      %527 = vmatpush.msra.mxu0 %v502
      %528 = vmatpush.msra.mxu0 %v501
      %529 = vmatpush.msra.mxu0 %v500
      %530 = vmatpush.msra.mxu0 %v499
      %531 = vmatpush.msra.mxu0 %v498
      %532 = vmatpush.msra.mxu0 %v497
      %533 = vmatmul.f32.gmra.mxu0 %v416
      %v534 = vpop.f32.mrf.mxu0
      %v535 = vadd.f32 %v515, %v534
      %536 = vdwg.mxu0
      %v537 = vmul.f32 %v455, 0.35355338
      %vm538 = vcmask 64512
      %v540 = vsel %vm538, %v537, 0
      %v543 = vsel %vm538, %v495, 0
      %545 = vmatpush.xpose.msra.mxu0 0.0
      %546 = vmatpush.xpose.msra.mxu0 0.0
      %547 = vmatpush.xpose.msra.mxu0 0.0
      %548 = vmatpush.xpose.msra.mxu0 0.0
      %549 = vmatpush.xpose.msra.mxu0 0.0
      %550 = vmatpush.xpose.msra.mxu0 0.0
      %551 = vmatpush.xpose.msra.mxu0 0.0
      %552 = vmatpush.xpose.msra.mxu0 0.0
      %553 = vmatpush.xpose.msra.mxu0 0.0
      %554 = vmatpush.xpose.msra.mxu0 0.0
      %555 = vmatpush.xpose.msra.mxu0 0.0
      %556 = vmatpush.xpose.msra.mxu0 0.0
      %557 = vmatpush.xpose.msra.mxu0 0.0
      %558 = vmatpush.xpose.msra.mxu0 0.0
      %559 = vmatpush.xpose.msra.mxu0 0.0
      %560 = vmatpush.xpose.msra.mxu0 %v543
      %561 = vmatmul.f32.gmra.mxu0 %v540
      %v562 = vpop.f32.mrf.mxu0
      %v563 = vadd.f32 0.0, %v562
      %564 = vdwg.mxu0
      %v565 = vsel %vm538, %v563, -inf
      %566 = vmax.xlane.f32.xlu0 %v565
      %v567 = vpop.xlane.xlu0 %566
      %v568 = vsub.f32 %v563, %v567
      %v569 = vmul.f32 %v568, 1.442695
      %v570 = vpow.pop %v569
      %v571 = vsel %vm538, %v570, 0.0
      %572 = vadd.xlane.f32.xlu0 %v571
      %v573 = vpop.xlane.xlu0 %572
      %v574 = vrcp.pop %v573
      %v575 = vmul.f32 %v573, %v574
      %v576 = vsub.f32 1.0, %v575
      %v577 = vmul.f32 %v574, %v576
      %v578 = vadd.f32 %v574, %v577
      %vm579 = vweird.f32 %v573
      %vm580 = vweird.f32 %v574
      %vm581 = vmor %vm579, %vm580
      %v582 = vsel %vm581, %v574, %v578
      %v583 = vand.u32 2147483647, %v573
      %vm584 = vcmp.eq.f32.partialorder %v583, 8.507059e+37
      %v585 = vand.u32 %v573, 2147483648
      %v586 = vor.u32 1.1754944e-38, %v585
      %v587 = vsel %vm584, %v586, %v582
      %v588 = vmul.f32 %v570, %v587
      %v590 = vsel %vm538, %v588, 0
      %592 = vmatpush.msra.mxu0 0.0
      %593 = vmatpush.msra.mxu0 0.0
      %594 = vmatpush.msra.mxu0 0.0
      %595 = vmatpush.msra.mxu0 0.0
      %596 = vmatpush.msra.mxu0 0.0
      %597 = vmatpush.msra.mxu0 0.0
      %598 = vmatpush.msra.mxu0 0.0
      %599 = vmatpush.msra.mxu0 0.0
      %600 = vmatpush.msra.mxu0 0.0
      %601 = vmatpush.msra.mxu0 0.0
      %602 = vmatpush.msra.mxu0 0.0
      %603 = vmatpush.msra.mxu0 0.0
      %604 = vmatpush.msra.mxu0 0.0
      %605 = vmatpush.msra.mxu0 0.0
      %606 = vmatpush.msra.mxu0 0.0
      %607 = vmatpush.msra.mxu0 %v535
      %608 = vmatmul.f32.gmra.mxu0 %v590
      %v609 = vpop.f32.mrf.mxu0
      %v610 = vadd.f32 0.0, %v609
      %611 = vdwg.mxu0
      %612 = vrot.lane.b32.xlu0 %v537, 120
      %v613 = vpop.permute.xlu0 %612
      %614 = vrot.lane.b32.xlu0 %v495, 120
      %v615 = vpop.permute.xlu0 %614
      %v616 = vsel %vm538, %v613, 0
      %v618 = vsel %vm538, %v615, 0
      %620 = vmatpush.xpose.msra.mxu0 0.0
      %621 = vmatpush.xpose.msra.mxu0 0.0
      %622 = vmatpush.xpose.msra.mxu0 0.0
      %623 = vmatpush.xpose.msra.mxu0 0.0
      %624 = vmatpush.xpose.msra.mxu0 0.0
      %625 = vmatpush.xpose.msra.mxu0 0.0
      %626 = vmatpush.xpose.msra.mxu0 0.0
      %627 = vmatpush.xpose.msra.mxu0 0.0
      %628 = vmatpush.xpose.msra.mxu0 0.0
      %629 = vmatpush.xpose.msra.mxu0 0.0
      %630 = vmatpush.xpose.msra.mxu0 0.0
      %631 = vmatpush.xpose.msra.mxu0 0.0
      %632 = vmatpush.xpose.msra.mxu0 0.0
      %633 = vmatpush.xpose.msra.mxu0 0.0
      %634 = vmatpush.xpose.msra.mxu0 0.0
      %635 = vmatpush.xpose.msra.mxu0 %v618
      %636 = vmatmul.f32.gmra.mxu0 %v616
      %v637 = vpop.f32.mrf.mxu0
      %v638 = vadd.f32 0.0, %v637
      %639 = vdwg.mxu0
      %v640 = vsel %vm538, %v638, -inf
      %641 = vmax.xlane.f32.xlu0 %v640
      %v642 = vpop.xlane.xlu0 %641
      %v643 = vsub.f32 %v638, %v642
      %v644 = vmul.f32 %v643, 1.442695
      %v645 = vpow.pop %v644
      %v646 = vsel %vm538, %v645, 0.0
      %647 = vadd.xlane.f32.xlu0 %v646
      %v648 = vpop.xlane.xlu0 %647
      %v649 = vrcp.pop %v648
      %v650 = vmul.f32 %v648, %v649
      %v651 = vsub.f32 1.0, %v650
      %v652 = vmul.f32 %v649, %v651
      %v653 = vadd.f32 %v649, %v652
      %vm654 = vweird.f32 %v648
      %vm655 = vweird.f32 %v649
      %vm656 = vmor %vm654, %vm655
      %v657 = vsel %vm656, %v649, %v653
      %v658 = vand.u32 2147483647, %v648
      %vm659 = vcmp.eq.f32.partialorder %v658, 8.507059e+37
      %v660 = vand.u32 %v648, 2147483648
      %v661 = vor.u32 1.1754944e-38, %v660
      %v662 = vsel %vm659, %v661, %v657
      %v663 = vmul.f32 %v645, %v662
      %665 = vrot.lane.b32.xlu0 %v535, 120
      %v666 = vpop.permute.xlu0 %665
      %v669 = vsel %vm538, %v663, 0
      %671 = vmatpush.msra.mxu0 0.0
      %672 = vmatpush.msra.mxu0 0.0
      %673 = vmatpush.msra.mxu0 0.0
      %674 = vmatpush.msra.mxu0 0.0
      %675 = vmatpush.msra.mxu0 0.0
      %676 = vmatpush.msra.mxu0 0.0
      %677 = vmatpush.msra.mxu0 0.0
      %678 = vmatpush.msra.mxu0 0.0
      %679 = vmatpush.msra.mxu0 0.0
      %680 = vmatpush.msra.mxu0 0.0
      %681 = vmatpush.msra.mxu0 0.0
      %682 = vmatpush.msra.mxu0 0.0
      %683 = vmatpush.msra.mxu0 0.0
      %684 = vmatpush.msra.mxu0 0.0
      %685 = vmatpush.msra.mxu0 0.0
      %686 = vmatpush.msra.mxu0 %v666
      %687 = vmatmul.f32.gmra.mxu0 %v669
      %v688 = vpop.f32.mrf.mxu0
      %v689 = vadd.f32 0.0, %v688
      %690 = vdwg.mxu0
      %691 = vrot.lane.b32.xlu0 %v537, 112
      %v692 = vpop.permute.xlu0 %691
      %693 = vrot.lane.b32.xlu0 %v495, 112
      %v694 = vpop.permute.xlu0 %693
      %v695 = vsel %vm538, %v692, 0
      %v697 = vsel %vm538, %v694, 0
      %699 = vmatpush.xpose.msra.mxu0 0.0
      %700 = vmatpush.xpose.msra.mxu0 0.0
      %701 = vmatpush.xpose.msra.mxu0 0.0
      %702 = vmatpush.xpose.msra.mxu0 0.0
      %703 = vmatpush.xpose.msra.mxu0 0.0
      %704 = vmatpush.xpose.msra.mxu0 0.0
      %705 = vmatpush.xpose.msra.mxu0 0.0
      %706 = vmatpush.xpose.msra.mxu0 0.0
      %707 = vmatpush.xpose.msra.mxu0 0.0
      %708 = vmatpush.xpose.msra.mxu0 0.0
      %709 = vmatpush.xpose.msra.mxu0 0.0
      %710 = vmatpush.xpose.msra.mxu0 0.0
      %711 = vmatpush.xpose.msra.mxu0 0.0
      %712 = vmatpush.xpose.msra.mxu0 0.0
      %713 = vmatpush.xpose.msra.mxu0 0.0
      %714 = vmatpush.xpose.msra.mxu0 %v697
      %715 = vmatmul.f32.gmra.mxu0 %v695
      %v716 = vpop.f32.mrf.mxu0
      %v717 = vadd.f32 0.0, %v716
      %718 = vdwg.mxu0
      %v719 = vsel %vm538, %v717, -inf
      %720 = vmax.xlane.f32.xlu0 %v719
      %v721 = vpop.xlane.xlu0 %720
      %v722 = vsub.f32 %v717, %v721
      %v723 = vmul.f32 %v722, 1.442695
      %v724 = vpow.pop %v723
      %v725 = vsel %vm538, %v724, 0.0
      %726 = vadd.xlane.f32.xlu0 %v725
      %v727 = vpop.xlane.xlu0 %726
      %v728 = vrcp.pop %v727
      %v729 = vmul.f32 %v727, %v728
      %v730 = vsub.f32 1.0, %v729
      %v731 = vmul.f32 %v728, %v730
      %v732 = vadd.f32 %v728, %v731
      %vm733 = vweird.f32 %v727
      %vm734 = vweird.f32 %v728
      %vm735 = vmor %vm733, %vm734
      %v736 = vsel %vm735, %v728, %v732
      %v737 = vand.u32 2147483647, %v727
      %vm738 = vcmp.eq.f32.partialorder %v737, 8.507059e+37
      %v739 = vand.u32 %v727, 2147483648
      %v740 = vor.u32 1.1754944e-38, %v739
      %v741 = vsel %vm738, %v740, %v736
      %v742 = vmul.f32 %v724, %v741
      %743 = vrot.lane.b32.xlu0 %v535, 112
      %v744 = vpop.permute.xlu0 %743
      %v747 = vsel %vm538, %v742, 0
      %749 = vmatpush.msra.mxu0 0.0
      %750 = vmatpush.msra.mxu0 0.0
      %751 = vmatpush.msra.mxu0 0.0
      %752 = vmatpush.msra.mxu0 0.0
      %753 = vmatpush.msra.mxu0 0.0
      %754 = vmatpush.msra.mxu0 0.0
      %755 = vmatpush.msra.mxu0 0.0
      %756 = vmatpush.msra.mxu0 0.0
      %757 = vmatpush.msra.mxu0 0.0
      %758 = vmatpush.msra.mxu0 0.0
      %759 = vmatpush.msra.mxu0 0.0
      %760 = vmatpush.msra.mxu0 0.0
      %761 = vmatpush.msra.mxu0 0.0
      %762 = vmatpush.msra.mxu0 0.0
      %763 = vmatpush.msra.mxu0 0.0
      %764 = vmatpush.msra.mxu0 %v744
      %765 = vmatmul.f32.gmra.mxu0 %v747
      %v766 = vpop.f32.mrf.mxu0
      %v767 = vadd.f32 0.0, %v766
      %768 = vdwg.mxu0
      %769 = vrot.lane.b32.xlu0 %v537, 104
      %v770 = vpop.permute.xlu0 %769
      %771 = vrot.lane.b32.xlu0 %v495, 104
      %v772 = vpop.permute.xlu0 %771
      %v773 = vsel %vm538, %v770, 0
      %v775 = vsel %vm538, %v772, 0
      %777 = vmatpush.xpose.msra.mxu0 0.0
      %778 = vmatpush.xpose.msra.mxu0 0.0
      %779 = vmatpush.xpose.msra.mxu0 0.0
      %780 = vmatpush.xpose.msra.mxu0 0.0
      %781 = vmatpush.xpose.msra.mxu0 0.0
      %782 = vmatpush.xpose.msra.mxu0 0.0
      %783 = vmatpush.xpose.msra.mxu0 0.0
      %784 = vmatpush.xpose.msra.mxu0 0.0
      %785 = vmatpush.xpose.msra.mxu0 0.0
      %786 = vmatpush.xpose.msra.mxu0 0.0
      %787 = vmatpush.xpose.msra.mxu0 0.0
      %788 = vmatpush.xpose.msra.mxu0 0.0
      %789 = vmatpush.xpose.msra.mxu0 0.0
      %790 = vmatpush.xpose.msra.mxu0 0.0
      %791 = vmatpush.xpose.msra.mxu0 0.0
      %792 = vmatpush.xpose.msra.mxu0 %v775
      %793 = vmatmul.f32.gmra.mxu0 %v773
      %v794 = vpop.f32.mrf.mxu0
      %v795 = vadd.f32 0.0, %v794
      %796 = vdwg.mxu0
      %v797 = vsel %vm538, %v795, -inf
      %798 = vmax.xlane.f32.xlu0 %v797
      %v799 = vpop.xlane.xlu0 %798
      %v800 = vsub.f32 %v795, %v799
      %v801 = vmul.f32 %v800, 1.442695
      %v802 = vpow.pop %v801
      %v803 = vsel %vm538, %v802, 0.0
      %804 = vadd.xlane.f32.xlu0 %v803
      %v805 = vpop.xlane.xlu0 %804
      %v806 = vrcp.pop %v805
      %v807 = vmul.f32 %v805, %v806
      %v808 = vsub.f32 1.0, %v807
      %v809 = vmul.f32 %v806, %v808
      %v810 = vadd.f32 %v806, %v809
      %vm811 = vweird.f32 %v805
      %vm812 = vweird.f32 %v806
      %vm813 = vmor %vm811, %vm812
      %v814 = vsel %vm813, %v806, %v810
      %v815 = vand.u32 2147483647, %v805
      %vm816 = vcmp.eq.f32.partialorder %v815, 8.507059e+37
      %v817 = vand.u32 %v805, 2147483648
      %v818 = vor.u32 1.1754944e-38, %v817
      %v819 = vsel %vm816, %v818, %v814
      %v820 = vmul.f32 %v802, %v819
      %821 = vrot.lane.b32.xlu0 %v535, 104
      %v822 = vpop.permute.xlu0 %821
      %v825 = vsel %vm538, %v820, 0
      %827 = vmatpush.msra.mxu0 0.0
      %828 = vmatpush.msra.mxu0 0.0
      %829 = vmatpush.msra.mxu0 0.0
      %830 = vmatpush.msra.mxu0 0.0
      %831 = vmatpush.msra.mxu0 0.0
      %832 = vmatpush.msra.mxu0 0.0
      %833 = vmatpush.msra.mxu0 0.0
      %834 = vmatpush.msra.mxu0 0.0
      %835 = vmatpush.msra.mxu0 0.0
      %836 = vmatpush.msra.mxu0 0.0
      %837 = vmatpush.msra.mxu0 0.0
      %838 = vmatpush.msra.mxu0 0.0
      %839 = vmatpush.msra.mxu0 0.0
      %840 = vmatpush.msra.mxu0 0.0
      %841 = vmatpush.msra.mxu0 0.0
      %842 = vmatpush.msra.mxu0 %v822
      %843 = vmatmul.f32.gmra.mxu0 %v825
      %v844 = vpop.f32.mrf.mxu0
      %v845 = vadd.f32 0.0, %v844
      %846 = vdwg.mxu0
      %848 = vrot.lane.b32.xlu0 %v689, 8
      %v849 = vpop.permute.xlu0 %848
      %852 = vrot.lane.b32.xlu0 %v767, 16
      %v853 = vpop.permute.xlu0 %852
      %856 = vrot.lane.b32.xlu0 %v845, 24
      %v857 = vpop.permute.xlu0 %856
      %v859 = vsel %vm538, %v610, %v849
      %vm860 = vcmask 130048
      %v861 = vsel %vm860, %v859, %v853
      %vm862 = vcmask 195584
      %v863 = vsel %vm862, %v861, %v857
      %v864 = vld [vmem:[%s9] sm:$0xff]
      %v865 = vld [vmem:[%s9 + $0x8] sm:$0xff]
      %v866 = vld [vmem:[%s9 + $0x10] sm:$0xff]
      %v867 = vld [vmem:[%s9 + $0x18] sm:$0xff]
      %v868 = vld [vmem:[%s10] sm:$0x1]
      %v870 = vperm.slane %v868, 0
      %vm872 = vcmask 261120
      %v874 = vsel %vm872, %v863, 0
      %876 = vmatpush.msra.mxu0 0.0
      %877 = vmatpush.msra.mxu0 0.0
      %878 = vmatpush.msra.mxu0 0.0
      %879 = vmatpush.msra.mxu0 0.0
      %880 = vmatpush.msra.mxu0 0.0
      %881 = vmatpush.msra.mxu0 0.0
      %882 = vmatpush.msra.mxu0 0.0
      %883 = vmatpush.msra.mxu0 0.0
      %884 = vmatpush.msra.mxu0 0.0
      %885 = vmatpush.msra.mxu0 0.0
      %886 = vmatpush.msra.mxu0 0.0
      %887 = vmatpush.msra.mxu0 0.0
      %888 = vmatpush.msra.mxu0 %v867
      %889 = vmatpush.msra.mxu0 %v866
      %890 = vmatpush.msra.mxu0 %v865
      %891 = vmatpush.msra.mxu0 %v864
      %892 = vmatmul.f32.gmra.mxu0 %v874
      %v893 = vpop.f32.mrf.mxu0
      %v894 = vadd.f32 %v870, %v893
      %895 = vdwg.mxu0
      %896 = vst [vmem:[%s381] sm:$0xff] %v894
      %p897 = scmp.lt.s32.totalorder %s22, 1
      %s898 = scalar_select %p897, %s22, 1
      %s899 = smul.addr %s898, 8
      %s900 = scalar_lea.vmem %s11, %s899
      // Predicated region
      $region65: #{encoder_block_forward.2} parent=63 // pred_check
        %p901 = pneg %p276
      $region66: #{encoder_block_forward.2} parent=63 // pred_check_branch
        %903 = sbr.rel (%p901) target = $region68
      $region67: #{encoder_block_forward.2} parent=63 // pred_region
        _
      $region68: #{encoder_block_forward.2} parent=63 // pred_fallthru
        _
    $region64: #{encoder_block_forward.2} parent=5 // pred_fallthru
      _
    %p904 = scmp.le.s32.totalorder 2, %s17
    // Predicated region
    $region69: #{encoder_block_forward.2} parent=5 // pred_check
      %p905 = pneg %p904
    $region70: #{encoder_block_forward.2} parent=5 // pred_check_branch
      %907 = sbr.rel (%p905) target = $region72
    $region71: #{encoder_block_forward.2} parent=5 // pred_region
      %s908 = ssub.s32 %s17, 2
      // Predicated region
      $region73: #{encoder_block_forward.2} parent=71 // pred_check
        %p909 = pneg %p282
      $region74: #{encoder_block_forward.2} parent=71 // pred_check_branch
        %911 = sbr.rel (%p909) target = $region76
      $region75: #{encoder_block_forward.2} parent=71 // pred_region
        %p912 = scmp.lt.s32.totalorder %s23, 1
        %s913 = scalar_select %p912, %s23, 1
        %s914 = smul.addr %s913, 8
        %s915 = scalar_lea.vmem %s11, %s914
      $region76: #{encoder_block_forward.2} parent=71 // pred_fallthru
        _
    $region72: #{encoder_block_forward.2} parent=5 // pred_fallthru
      _
  $region6: #{encoder_block_forward.2} parent=0 // loop_footer
    %s21 = sadd.s32 1, %s17
  $region7: #{encoder_block_forward.2} parent=0 // loop_footer_branch
    %16 = sbr.rel target = $region3
  $region8: #{encoder_block_forward.2} parent=0 // loop_exit
    _

</llo_original>
